<compile_context>
chip_gen: v6e
topology: v6e:2x2x1
jax: 0.10.0
libtpu: 0.0.40
codegen_flags: <defaults>
</compile_context>

<pallas_src>
import jax
import jax.numpy as jnp
from jax.experimental import pallas as pl
from jax.experimental.pallas import tpu as pltpu

LANE = 128
BF16_SUBLANE = 16  # bf16 packs 16 rows per sublane group


def _round_up(x, m):
    return ((x + m - 1) // m) * m


def _mlp_kernel(x_ref, w1_ref, b1_ref, w2_ref, b2_ref, w3_ref, b3_ref, o_ref):
    # Fused 3-layer MLP: relu(x@W1+b1) -> relu(.@W2+b2) -> .@W3+b3
    # x arrives in f32; cast to bf16 right before the first MXU op (cheap VPU
    # work hidden under matmul).  Accumulation / bias / ReLU stay in f32.
    x = x_ref[...].astype(jnp.bfloat16)
    h1 = jnp.dot(x, w1_ref[...], preferred_element_type=jnp.float32) + b1_ref[...]
    h1 = jnp.maximum(h1, 0.0).astype(jnp.bfloat16)
    h2 = jnp.dot(h1, w2_ref[...], preferred_element_type=jnp.float32) + b2_ref[...]
    h2 = jnp.maximum(h2, 0.0).astype(jnp.bfloat16)
    logits = jnp.dot(h2, w3_ref[...], preferred_element_type=jnp.float32) + b3_ref[...]
    o_ref[...] = logits.astype(o_ref.dtype)


def clip_head_forward(image_features, params, *, batch_tile=512, force_pallas=False):
    """Forward pass of the CLIP classification head (fc1->relu->fc2->relu->fc3).

    image_features: (B, fc_in_dim) float array.
    params: dict with w1 (D,H1), b1 (1,H1), w2 (H1,H2), b2 (1,H2), w3 (H2,C), b3 (1,C).
    Returns (B, C) float32 logits.
    """
    x = image_features.astype(jnp.float32)  # no-op if already f32, matches the module
    B, D = x.shape
    w1, b1 = params["w1"], params["b1"]
    w2, b2 = params["w2"], params["b2"]
    w3, b3 = params["w3"], params["b3"]
    H1 = w1.shape[1]
    H2 = w2.shape[1]
    C = w3.shape[1]

    # Tiny batches are launch + resident-weight-DMA (~1.6 MiB) bound for a
    # custom kernel; route them through plain XLA unless explicitly forced.
    if B <= 64 and not force_pallas:
        return _ref_forward(x, params)

    # bf16 MXU weights; biases stay f32.
    w1_bf = w1.astype(jnp.bfloat16)
    w2_bf = w2.astype(jnp.bfloat16)
    w3_bf = w3.astype(jnp.bfloat16)
    b1_f = b1.astype(jnp.float32)
    b2_f = b2.astype(jnp.float32)

    # Pad the classifier to a lane-dense (multiple of 128) output width so the
    # output stores are unmasked full vst.
    Cp = max(LANE, _round_up(C, LANE))
    w3_p = jnp.zeros((H2, Cp), jnp.bfloat16).at[:, :C].set(w3_bf)
    b3_p = jnp.zeros((1, Cp), jnp.float32).at[:, :C].set(b3.astype(jnp.float32))

    # Batch tile: big (default 512) to amortize the ~0.35 us per-grid-step
    # overhead, rounded to a multiple of 16 (bf16 sublane packing), capped so
    # at most one tile of padding is wasted.
    tb = _round_up(max(BF16_SUBLANE, min(batch_tile, _round_up(B, BF16_SUBLANE))),
                   BF16_SUBLANE)
    # v7x megacore: make sure the "parallel" batch axis has >= 2 grid steps so
    # both TensorCores get work (harmless on single-TC v5e/v6e).
    if _round_up(B, tb) // tb < 2 and tb > BF16_SUBLANE:
        tb = _round_up((tb + 1) // 2, BF16_SUBLANE)
    Bp = _round_up(B, tb)
    if Bp != B:
        # Only the (rare) ragged tail is padded; x itself is not re-cast.
        x = jnp.pad(x, ((0, Bp - B), (0, 0)))

    grid = (Bp // tb,)

    # Grid-invariant (resident) operands: constant block index, so the
    # pipeline DMAs them once and reuses the buffer on every step.
    def _resident(shape):
        return pl.BlockSpec(shape, lambda i: (0, 0))

    flops = 2 * Bp * (D * H1 + H1 * H2 + H2 * Cp)
    bytes_accessed = (
        Bp * D * 4                                   # x (f32 in)
        + (D * H1 + H1 * H2 + H2 * Cp) * 2           # bf16 weights
        + (H1 + H2 + Cp) * 4                         # biases
        + Bp * Cp * 4                                # f32 out
    )

    out = pl.pallas_call(
        _mlp_kernel,
        out_shape=jax.ShapeDtypeStruct((Bp, Cp), jnp.float32),
        grid_spec=pltpu.PrefetchScalarGridSpec(
            num_scalar_prefetch=0,
            grid=grid,
            in_specs=[
                pl.BlockSpec((tb, D), lambda i: (i, 0)),  # x tile (pipelined)
                _resident((D, H1)),                       # W1
                _resident((1, H1)),                       # b1
                _resident((H1, H2)),                      # W2
                _resident((1, H2)),                       # b2
                _resident((H2, Cp)),                      # W3 (lane-padded)
                _resident((1, Cp)),                       # b3 (lane-padded)
            ],
            out_specs=pl.BlockSpec((tb, Cp), lambda i: (i, 0)),
        ),
        compiler_params=pltpu.CompilerParams(
            dimension_semantics=("parallel",),
            vmem_limit_bytes=32 * 1024 * 1024,
        ),
        cost_estimate=pl.CostEstimate(
            flops=flops, transcendentals=0, bytes_accessed=bytes_accessed),
    )(x, w1_bf, b1_f, w2_bf, b2_f, w3_p, b3_p)

    # Deferred thin slice back to the logical (B, C) shape.
    return out[:B, :C]


def init_params(key, fc_in_dim=512, hidden_dim_1=1024, hidden_dim_2=256, num_classes=16):
    """Deterministic parameter init matching nn.Linear shapes.

    PyTorch Linear stores weight as (out, in); we store the transpose (in, out)
    so the kernel can compute x @ W directly.
    """
    k1, k2, k3, k4, k5, k6 = jax.random.split(key, 6)

    def uinit(k, shape, fan_in):
        bound = 1.0 / jnp.sqrt(fan_in)
        return jax.random.uniform(k, shape, jnp.float32, -bound, bound)

    return {
        "w1": uinit(k1, (fc_in_dim, hidden_dim_1), fc_in_dim),
        "b1": uinit(k2, (1, hidden_dim_1), fc_in_dim),
        "w2": uinit(k3, (hidden_dim_1, hidden_dim_2), hidden_dim_1),
        "b2": uinit(k4, (1, hidden_dim_2), hidden_dim_1),
        "w3": uinit(k5, (hidden_dim_2, num_classes), hidden_dim_2),
        "b3": uinit(k6, (1, num_classes), hidden_dim_2),
    }


def _ref_forward(x, p):
    """Pure-JAX reference mirroring the kernel's bf16-MXU / f32-accumulate path."""
    xb = x.astype(jnp.bfloat16)
    w1 = p["w1"].astype(jnp.bfloat16)
    w2 = p["w2"].astype(jnp.bfloat16)
    w3 = p["w3"].astype(jnp.bfloat16)
    h1 = jnp.maximum(
        jnp.dot(xb, w1, preferred_element_type=jnp.float32) + p["b1"], 0.0)
    h2 = jnp.maximum(
        jnp.dot(h1.astype(jnp.bfloat16), w2, preferred_element_type=jnp.float32) + p["b2"], 0.0)
    return jnp.dot(h2.astype(jnp.bfloat16), w3, preferred_element_type=jnp.float32) + p["b3"]


if __name__ == "__main__":
    # TODO(synk): the frozen CLIP backbone (clip.load / preprocess / encode_image /
    # encode_text / compute_similarity) has no Pallas equivalent here; forward()
    # only consumes precomputed image_features, which is what we implement.
    key = jax.random.PRNGKey(0)
    kx, kp = jax.random.split(key)

    B = 32
    FC_IN = 512        # ViT-B/32 visual projection dim
    H1, H2 = 1024, 256
    NUM_CLASSES = 16

    image_features = jax.random.normal(kx, (B, FC_IN), jnp.float32)
    params = init_params(kp, FC_IN, H1, H2, NUM_CLASSES)

    # force_pallas=True so the demo actually exercises the kernel at small B
    # (and, via the >=2-step rule, a multi-step pipelined grid).
    logits = clip_head_forward(image_features, params, force_pallas=True)
    logits = jax.block_until_ready(logits)

    ref = _ref_forward(image_features, params)
    assert logits.shape == (B, NUM_CLASSES)
    assert jnp.allclose(logits, ref, atol=2e-2, rtol=2e-2), float(
        jnp.max(jnp.abs(logits - ref)))

    print("KERNEL_OK")
</pallas_src>

<mosaic_0001>
module attributes {stable_mosaic.version = 11 : i64} {
  func.func @_mlp_kernel(%arg0: i32, %arg1: memref<16x512xf32, #tpu.memory_space<vmem>>, %arg2: memref<512x1024xbf16, #tpu.memory_space<vmem>>, %arg3: memref<1x1024xf32, #tpu.memory_space<vmem>>, %arg4: memref<1024x256xbf16, #tpu.memory_space<vmem>>, %arg5: memref<1x256xf32, #tpu.memory_space<vmem>>, %arg6: memref<256x128xbf16, #tpu.memory_space<vmem>>, %arg7: memref<1x128xf32, #tpu.memory_space<vmem>>, %arg8: memref<16x128xf32, #tpu.memory_space<vmem>>) attributes {dimension_semantics = [#tpu.dimension_semantics<parallel>], iteration_bounds = array<i64: 2>, scalar_prefetch = 0 : i64, scratch_operands = 0 : i64, tpu.core_type = #tpu.core_type<tc>, window_params = [{transform_indices = @transform_0, window_bounds = array<i64: 16, 512>}, {pipeline_mode = #tpu.pipeline_mode<synchronous>, transform_indices = @transform_1, window_bounds = array<i64: 512, 1024>}, {pipeline_mode = #tpu.pipeline_mode<synchronous>, transform_indices = @transform_2, window_bounds = array<i64: 1, 1024>}, {pipeline_mode = #tpu.pipeline_mode<synchronous>, transform_indices = @transform_3, window_bounds = array<i64: 1024, 256>}, {pipeline_mode = #tpu.pipeline_mode<synchronous>, transform_indices = @transform_4, window_bounds = array<i64: 1, 256>}, {pipeline_mode = #tpu.pipeline_mode<synchronous>, transform_indices = @transform_5, window_bounds = array<i64: 256, 128>}, {pipeline_mode = #tpu.pipeline_mode<synchronous>, transform_indices = @transform_6, window_bounds = array<i64: 1, 128>}, {transform_indices = @transform_7, window_bounds = array<i64: 16, 128>}]} {
    %c0 = arith.constant 0 : index
    %c0_0 = arith.constant 0 : index
    %0 = vector.load %arg1[%c0, %c0_0] : memref<16x512xf32, #tpu.memory_space<vmem>>, vector<16x512xf32>
    %1 = arith.truncf %0 : vector<16x512xf32> to vector<16x512xbf16>
    %c0_1 = arith.constant 0 : index
    %c0_2 = arith.constant 0 : index
    %2 = vector.load %arg2[%c0_1, %c0_2] : memref<512x1024xbf16, #tpu.memory_space<vmem>>, vector<512x1024xbf16>
    %cst = arith.constant dense<0.000000e+00> : vector<16x1024xf32>
    %3 = tpu.matmul %1, %2, %cst {dimension_numbers = #tpu.dot_dimension_numbers<[1], [0], [0], [1], [0, 0, 1, 1], [], []>} : vector<16x512xbf16>, vector<512x1024xbf16>, vector<16x1024xf32> -> vector<16x1024xf32>
    %c0_3 = arith.constant 0 : index
    %c0_4 = arith.constant 0 : index
    %4 = vector.load %arg3[%c0_3, %c0_4] : memref<1x1024xf32, #tpu.memory_space<vmem>>, vector<1x1024xf32>
    %5 = vector.broadcast %4 : vector<1x1024xf32> to vector<16x1024xf32>
    %6 = arith.addf %3, %5 : vector<16x1024xf32>
    %cst_5 = arith.constant 0.000000e+00 : f32
    %7 = vector.broadcast %cst_5 : f32 to vector<16x1024xf32>
    %8 = arith.maximumf %6, %7 : vector<16x1024xf32>
    %9 = arith.truncf %8 : vector<16x1024xf32> to vector<16x1024xbf16>
    %c0_6 = arith.constant 0 : index
    %c0_7 = arith.constant 0 : index
    %10 = vector.load %arg4[%c0_6, %c0_7] : memref<1024x256xbf16, #tpu.memory_space<vmem>>, vector<1024x256xbf16>
    %cst_8 = arith.constant dense<0.000000e+00> : vector<16x256xf32>
    %11 = tpu.matmul %9, %10, %cst_8 {dimension_numbers = #tpu.dot_dimension_numbers<[1], [0], [0], [1], [0, 0, 1, 1], [], []>} : vector<16x1024xbf16>, vector<1024x256xbf16>, vector<16x256xf32> -> vector<16x256xf32>
    %c0_9 = arith.constant 0 : index
    %c0_10 = arith.constant 0 : index
    %12 = vector.load %arg5[%c0_9, %c0_10] : memref<1x256xf32, #tpu.memory_space<vmem>>, vector<1x256xf32>
    %13 = vector.broadcast %12 : vector<1x256xf32> to vector<16x256xf32>
    %14 = arith.addf %11, %13 : vector<16x256xf32>
    %cst_11 = arith.constant 0.000000e+00 : f32
    %15 = vector.broadcast %cst_11 : f32 to vector<16x256xf32>
    %16 = arith.maximumf %14, %15 : vector<16x256xf32>
    %17 = arith.truncf %16 : vector<16x256xf32> to vector<16x256xbf16>
    %c0_12 = arith.constant 0 : index
    %c0_13 = arith.constant 0 : index
    %18 = vector.load %arg6[%c0_12, %c0_13] : memref<256x128xbf16, #tpu.memory_space<vmem>>, vector<256x128xbf16>
    %cst_14 = arith.constant dense<0.000000e+00> : vector<16x128xf32>
    %19 = tpu.matmul %17, %18, %cst_14 {dimension_numbers = #tpu.dot_dimension_numbers<[1], [0], [0], [1], [0, 0, 1, 1], [], []>} : vector<16x256xbf16>, vector<256x128xbf16>, vector<16x128xf32> -> vector<16x128xf32>
    %c0_15 = arith.constant 0 : index
    %c0_16 = arith.constant 0 : index
    %20 = vector.load %arg7[%c0_15, %c0_16] : memref<1x128xf32, #tpu.memory_space<vmem>>, vector<1x128xf32>
    %21 = vector.broadcast %20 : vector<1x128xf32> to vector<16x128xf32>
    %22 = arith.addf %19, %21 : vector<16x128xf32>
    %c0_17 = arith.constant 0 : index
    %c0_18 = arith.constant 0 : index
    %23 = vector.load %arg8[%c0_17, %c0_18] : memref<16x128xf32, #tpu.memory_space<vmem>>, vector<16x128xf32>
    tpu.vector_store %arg8[%c0_17, %c0_18], %22 {strides = array<i32>} : memref<16x128xf32, #tpu.memory_space<vmem>>, vector<16x128xf32>,
    return
  }
  func.func @transform_0(%arg0: i32) -> (i32, i32) {
    %c0_i32 = arith.constant 0 : i32
    %c0_i32_0 = arith.constant 0 : i32
    return %arg0, %c0_i32 : i32, i32
  }
  func.func @transform_1(%arg0: i32) -> (i32, i32) {
    %c0_i32 = arith.constant 0 : i32
    %c0_i32_0 = arith.constant 0 : i32
    %c0_i32_1 = arith.constant 0 : i32
    return %c0_i32, %c0_i32_0 : i32, i32
  }
  func.func @transform_2(%arg0: i32) -> (i32, i32) {
    %c0_i32 = arith.constant 0 : i32
    %c0_i32_0 = arith.constant 0 : i32
    %c0_i32_1 = arith.constant 0 : i32
    return %c0_i32, %c0_i32_0 : i32, i32
  }
  func.func @transform_3(%arg0: i32) -> (i32, i32) {
    %c0_i32 = arith.constant 0 : i32
    %c0_i32_0 = arith.constant 0 : i32
    %c0_i32_1 = arith.constant 0 : i32
    return %c0_i32, %c0_i32_0 : i32, i32
  }
  func.func @transform_4(%arg0: i32) -> (i32, i32) {
    %c0_i32 = arith.constant 0 : i32
    %c0_i32_0 = arith.constant 0 : i32
    %c0_i32_1 = arith.constant 0 : i32
    return %c0_i32, %c0_i32_0 : i32, i32
  }
  func.func @transform_5(%arg0: i32) -> (i32, i32) {
    %c0_i32 = arith.constant 0 : i32
    %c0_i32_0 = arith.constant 0 : i32
    %c0_i32_1 = arith.constant 0 : i32
    return %c0_i32, %c0_i32_0 : i32, i32
  }
  func.func @transform_6(%arg0: i32) -> (i32, i32) {
    %c0_i32 = arith.constant 0 : i32
    %c0_i32_0 = arith.constant 0 : i32
    %c0_i32_1 = arith.constant 0 : i32
    return %c0_i32, %c0_i32_0 : i32, i32
  }
  func.func @transform_7(%arg0: i32) -> (i32, i32) {
    %c0_i32 = arith.constant 0 : i32
    %c0_i32_0 = arith.constant 0 : i32
    return %arg0, %c0_i32 : i32, i32
  }
}

</mosaic_0001>

<llo_original>
// kernel: tpu_custom_call.1
$region0: #{tpu_custom_call.1}
  #allocation0 [shape = 'u32[]', space=smem, size = 0x4, offset = 0x4, fixed_abs, tag = 'smem constant byte address 0x4 - core index']
  #allocation1 [shape = 'u32[144,128]{1,0:T(1,128)}', space=vmem, size = 0x12000, scoped, tag = 'internal scratch']
  %s0 = inlined_call_operand.hbm [shape: f32[32,512], index: 0, kind: input, shape index: {}]
  %s1 = inlined_call_operand.hbm [shape: bf16[512,1024], index: 1, kind: input, shape index: {}]
  %s2 = inlined_call_operand.hbm [shape: f32[1,1024], index: 2, kind: input, shape index: {}]
  %s3 = inlined_call_operand.hbm [shape: bf16[1024,256], index: 3, kind: input, shape index: {}]
  %s4 = inlined_call_operand.vmem [shape: f32[1,256], index: 4, kind: input, shape index: {}]
  %s5 = inlined_call_operand.hbm [shape: bf16[256,128], index: 5, kind: input, shape index: {}]
  %s6 = inlined_call_operand.vmem [shape: f32[1,128], index: 6, kind: input, shape index: {}]
  %s7 = inlined_call_operand.hbm [shape: f32[32,128], index: 7, kind: output, shape index: {}]
  %s8 = sld [smem:[#allocation0]]
  $region81: #{tpu_custom_call.1} parent=0
    _
  %s10 = ssub.s32 1, %s8
  %s11 = scalar_select 0, %s10, %s8
  $region1: #{tpu_custom_call.1} parent=0
    #allocation2 [shape = 'u8[65536]{0}', space=vmem, size = 0x10000, scoped, tag = 'input window, operand 0']
    #allocation3 [shape = 's32[2]{0}', space=sflag, size = 0x8, scoped, tag = 'scoped memory for tpu_custom_call.1']
    #allocation4 [shape = 's32[2]{0}', space=sflag, size = 0x8, scoped, tag = 'scoped memory for tpu_custom_call.1']
    #allocation5 [shape = 'u8[1048576]{0}', space=vmem, size = 0x100000, scoped, tag = 'input window, operand 1, single buffered']
    #allocation6 [shape = 's32[1]{0}', space=sflag, size = 0x4, scoped, tag = 'scoped memory for tpu_custom_call.1']
    #allocation7 [shape = 'u8[4096]{0}', space=vmem, size = 0x1000, scoped, tag = 'input window, operand 2, single buffered']
    #allocation8 [shape = 'u8[524288]{0}', space=vmem, size = 0x80000, scoped, tag = 'input window, operand 3, single buffered']
    #allocation9 [shape = 's32[1]{0}', space=sflag, size = 0x4, scoped, tag = 'scoped memory for tpu_custom_call.1']
    #allocation10 [shape = 'u8[65536]{0}', space=vmem, size = 0x10000, scoped, tag = 'input window, operand 5, single buffered']
    #allocation11 [shape = 'u8[16384]{0}', space=vmem, size = 0x4000, scoped, tag = 'output window, operand 0']
    %12 = vsyncpa [#allocation3], 0
    %s13 = scalar_lea.sflag [#allocation3], 1
    %14 = vsyncpa %s13, 0
    %15 = vsyncpa [#allocation6], 0
    %16 = vsyncpa [#allocation9], 0
    %17 = vsyncpa [#allocation4], 0
    %s18 = scalar_lea.sflag [#allocation4], 1
    %19 = vsyncpa %s18, 0
    loop: start=0, step=1, limit=4
    $region2: #{tpu_custom_call.1} parent=1 // loop_pre_header
      _
    $region3: #{tpu_custom_call.1} parent=1 // loop_header
      %s21 = sphi 0, %s25
      %p22 = scmp.ge.s32.totalorder %s21, 4
      %s31 = sphi 0, %s33
      %s34 = sphi 0, %s31
      %s35 = sphi 0, %s34
      %s51 = sphi 0, %s35
      %s55 = sphi 0, %s55
      %s57 = sphi 0, %s55
      %s58 = sphi 0, %s57
      %s72 = sphi 0, %s58
      %s76 = sphi 0, %s76
      %s78 = sphi 0, %s76
      %s79 = sphi 0, %s78
      %s93 = sphi 0, %s79
      %s97 = sphi 0, %s97
      %s99 = sphi 0, %s97
      %s100 = sphi 0, %s99
      %s114 = sphi 0, %s100
      %s118 = sphi 0, %s118
      %s120 = sphi 0, %s118
      %s121 = sphi 0, %s120
      %s135 = sphi 0, %s121
      %s139 = sphi 0, %s139
      %s141 = sphi 0, %s139
      %s142 = sphi 0, %s141
      %s156 = sphi 0, %s142
      %s160 = sphi 0, %s160
      %s162 = sphi 0, %s160
      %s163 = sphi 0, %s162
      %s177 = sphi 0, %s163
      %s183 = sphi 0, %s185
      %s186 = sphi 0, %s183
      %s187 = sphi 0, %s186
      %s203 = sphi 0, %s187
    $region4: #{tpu_custom_call.1} parent=1 // loop_header_branch
      %24 = sbr.rel (%p22) target = $region8
    $region5: #{tpu_custom_call.1} parent=1 // loop_body
      %s26 = ssub.s32 %s21, 1
      %s27 = ssub.s32 %s21, 2
      %s28 = sadd.s32 %s21, 1
      %s29 = ssub.s32 %s21, %s28
      %p30 = scmp.eq.s32.totalorder %s29, 0
      %s32 = sadd.s32 %s31, 1
      %s33 = scalar_select %p30, %s31, %s32
      %p36 = pneg %p30
      %p37 = scmp.eq.s32.totalorder %s21, 1
      %p38 = por %p36, %p37
      %p39 = scmp.ne.s32.totalorder %s31, %s34
      %p40 = scmp.eq.s32.totalorder %s21, 0
      %p41 = por %p39, %p40
      %p42 = scmp.ne.s32.totalorder %s31, %s34
      %p43 = scmp.eq.s32.totalorder %s26, 1
      %p44 = por %p42, %p43
      %p45 = scmp.ne.s32.totalorder %s34, %s35
      %p46 = scmp.eq.s32.totalorder %s26, 0
      %p47 = por %p45, %p46
      %p48 = scmp.ne.s32.totalorder %s34, %s35
      %p49 = scmp.eq.s32.totalorder %s27, 1
      %p50 = por %p48, %p49
      %p52 = scmp.ne.s32.totalorder %s35, %s51
      %p53 = scmp.eq.s32.totalorder %s27, 0
      %p54 = por %p52, %p53
      %s56 = sadd.s32 %s55, 1
      %p59 = scmp.eq.s32.totalorder %s21, 1
      %p60 = scmp.ne.s32.totalorder %s55, %s57
      %p61 = scmp.eq.s32.totalorder %s21, 0
      %p62 = por %p60, %p61
      %p63 = scmp.ne.s32.totalorder %s55, %s57
      %p64 = scmp.eq.s32.totalorder %s26, 1
      %p65 = por %p63, %p64
      %p66 = scmp.ne.s32.totalorder %s57, %s58
      %p67 = scmp.eq.s32.totalorder %s26, 0
      %p68 = por %p66, %p67
      %p69 = scmp.ne.s32.totalorder %s57, %s58
      %p70 = scmp.eq.s32.totalorder %s27, 1
      %p71 = por %p69, %p70
      %p73 = scmp.ne.s32.totalorder %s58, %s72
      %p74 = scmp.eq.s32.totalorder %s27, 0
      %p75 = por %p73, %p74
      %s77 = sadd.s32 %s76, 1
      %p80 = scmp.eq.s32.totalorder %s21, 1
      %p81 = scmp.ne.s32.totalorder %s76, %s78
      %p82 = scmp.eq.s32.totalorder %s21, 0
      %p83 = por %p81, %p82
      %p84 = scmp.ne.s32.totalorder %s76, %s78
      %p85 = scmp.eq.s32.totalorder %s26, 1
      %p86 = por %p84, %p85
      %p87 = scmp.ne.s32.totalorder %s78, %s79
      %p88 = scmp.eq.s32.totalorder %s26, 0
      %p89 = por %p87, %p88
      %p90 = scmp.ne.s32.totalorder %s78, %s79
      %p91 = scmp.eq.s32.totalorder %s27, 1
      %p92 = por %p90, %p91
      %p94 = scmp.ne.s32.totalorder %s79, %s93
      %p95 = scmp.eq.s32.totalorder %s27, 0
      %p96 = por %p94, %p95
      %s98 = sadd.s32 %s97, 1
      %p101 = scmp.eq.s32.totalorder %s21, 1
      %p102 = scmp.ne.s32.totalorder %s97, %s99
      %p103 = scmp.eq.s32.totalorder %s21, 0
      %p104 = por %p102, %p103
      %p105 = scmp.ne.s32.totalorder %s97, %s99
      %p106 = scmp.eq.s32.totalorder %s26, 1
      %p107 = por %p105, %p106
      %p108 = scmp.ne.s32.totalorder %s99, %s100
      %p109 = scmp.eq.s32.totalorder %s26, 0
      %p110 = por %p108, %p109
      %p111 = scmp.ne.s32.totalorder %s99, %s100
      %p112 = scmp.eq.s32.totalorder %s27, 1
      %p113 = por %p111, %p112
      %p115 = scmp.ne.s32.totalorder %s100, %s114
      %p116 = scmp.eq.s32.totalorder %s27, 0
      %p117 = por %p115, %p116
      %s119 = sadd.s32 %s118, 1
      %p122 = scmp.eq.s32.totalorder %s21, 1
      %p123 = scmp.ne.s32.totalorder %s118, %s120
      %p124 = scmp.eq.s32.totalorder %s21, 0
      %p125 = por %p123, %p124
      %p126 = scmp.ne.s32.totalorder %s118, %s120
      %p127 = scmp.eq.s32.totalorder %s26, 1
      %p128 = por %p126, %p127
      %p129 = scmp.ne.s32.totalorder %s120, %s121
      %p130 = scmp.eq.s32.totalorder %s26, 0
      %p131 = por %p129, %p130
      %p132 = scmp.ne.s32.totalorder %s120, %s121
      %p133 = scmp.eq.s32.totalorder %s27, 1
      %p134 = por %p132, %p133
      %p136 = scmp.ne.s32.totalorder %s121, %s135
      %p137 = scmp.eq.s32.totalorder %s27, 0
      %p138 = por %p136, %p137
      %s140 = sadd.s32 %s139, 1
      %p143 = scmp.eq.s32.totalorder %s21, 1
      %p144 = scmp.ne.s32.totalorder %s139, %s141
      %p145 = scmp.eq.s32.totalorder %s21, 0
      %p146 = por %p144, %p145
      %p147 = scmp.ne.s32.totalorder %s139, %s141
      %p148 = scmp.eq.s32.totalorder %s26, 1
      %p149 = por %p147, %p148
      %p150 = scmp.ne.s32.totalorder %s141, %s142
      %p151 = scmp.eq.s32.totalorder %s26, 0
      %p152 = por %p150, %p151
      %p153 = scmp.ne.s32.totalorder %s141, %s142
      %p154 = scmp.eq.s32.totalorder %s27, 1
      %p155 = por %p153, %p154
      %p157 = scmp.ne.s32.totalorder %s142, %s156
      %p158 = scmp.eq.s32.totalorder %s27, 0
      %p159 = por %p157, %p158
      %s161 = sadd.s32 %s160, 1
      %p164 = scmp.eq.s32.totalorder %s21, 1
      %p165 = scmp.ne.s32.totalorder %s160, %s162
      %p166 = scmp.eq.s32.totalorder %s21, 0
      %p167 = por %p165, %p166
      %p168 = scmp.ne.s32.totalorder %s160, %s162
      %p169 = scmp.eq.s32.totalorder %s26, 1
      %p170 = por %p168, %p169
      %p171 = scmp.ne.s32.totalorder %s162, %s163
      %p172 = scmp.eq.s32.totalorder %s26, 0
      %p173 = por %p171, %p172
      %p174 = scmp.ne.s32.totalorder %s162, %s163
      %p175 = scmp.eq.s32.totalorder %s27, 1
      %p176 = por %p174, %p175
      %p178 = scmp.ne.s32.totalorder %s163, %s177
      %p179 = scmp.eq.s32.totalorder %s27, 0
      %p180 = por %p178, %p179
      %s181 = ssub.s32 %s21, %s28
      %p182 = scmp.eq.s32.totalorder %s181, 0
      %s184 = sadd.s32 %s183, 1
      %s185 = scalar_select %p182, %s183, %s184
      %p188 = pneg %p182
      %p189 = scmp.eq.s32.totalorder %s21, 1
      %p190 = por %p188, %p189
      %p191 = scmp.ne.s32.totalorder %s183, %s186
      %p192 = scmp.eq.s32.totalorder %s21, 0
      %p193 = por %p191, %p192
      %p194 = scmp.ne.s32.totalorder %s183, %s186
      %p195 = scmp.eq.s32.totalorder %s26, 1
      %p196 = por %p194, %p195
      %p197 = scmp.ne.s32.totalorder %s186, %s187
      %p198 = scmp.eq.s32.totalorder %s26, 0
      %p199 = por %p197, %p198
      %p200 = scmp.ne.s32.totalorder %s186, %s187
      %p201 = scmp.eq.s32.totalorder %s27, 1
      %p202 = por %p200, %p201
      %p204 = scmp.ne.s32.totalorder %s187, %s203
      %p205 = scmp.eq.s32.totalorder %s27, 0
      %p206 = por %p204, %p205
      %p207 = scmp.le.s32.totalorder 1, %s21
      %p208 = scmp.lt.s32.totalorder %s21, 3
      %p209 = pnand %p207, %p208
      %p210 = pneg %p209
      // Predicated region
      $region9: #{tpu_custom_call.1} parent=5 // pred_check
        _
      $region10: #{tpu_custom_call.1} parent=5 // pred_check_branch
        %212 = sbr.rel (%p209) target = $region12
      $region11: #{tpu_custom_call.1} parent=5 // pred_region
        %s213 = ssub.s32 %s21, 1
        // Predicated region
        $region13: #{tpu_custom_call.1} parent=11 // pred_check
          %p214 = pneg %p68
        $region14: #{tpu_custom_call.1} parent=11 // pred_check_branch
          %216 = sbr.rel (%p214) target = $region16
        $region15: #{tpu_custom_call.1} parent=11 // pred_region
          %s218 = ssub.s32 32768, 32768
          %219 = vsyncadd [#allocation6], %s218
          %s220 = sshll.u32 [#allocation5], 4
          %s221 = int_to_ptr.vmem [resolvable:$true] %s220
          %226 = dma.hbm_to_vmem [thread:$0]  %s1, 32768, %s221, [#allocation6], 512, 512, 32
        $region16: #{tpu_custom_call.1} parent=11 // pred_fallthru
          _
        // Predicated region
        $region17: #{tpu_custom_call.1} parent=11 // pred_check
          %p227 = pneg %p89
        $region18: #{tpu_custom_call.1} parent=11 // pred_check_branch
          %229 = sbr.rel (%p227) target = $region20
        $region19: #{tpu_custom_call.1} parent=11 // pred_region
          %s231 = ssub.s32 128, 128
          %232 = vsyncadd [#allocation6], %s231
          %s234 = sshll.u32 [#allocation7], 4
          %s235 = int_to_ptr.vmem [resolvable:$true] %s234
          %237 = dma.hbm_to_vmem [thread:$0]  %s2, 128, %s235, [#allocation6]
        $region20: #{tpu_custom_call.1} parent=11 // pred_fallthru
          _
        // Predicated region
        $region21: #{tpu_custom_call.1} parent=11 // pred_check
          %p238 = pneg %p110
        $region22: #{tpu_custom_call.1} parent=11 // pred_check_branch
          %240 = sbr.rel (%p238) target = $region24
        $region23: #{tpu_custom_call.1} parent=11 // pred_region
          %s242 = ssub.s32 16384, 16384
          %243 = vsyncadd [#allocation9], %s242
          %s244 = sshll.u32 [#allocation8], 4
          %s245 = int_to_ptr.vmem [resolvable:$true] %s244
          %250 = dma.hbm_to_vmem [thread:$0]  %s3, 16384, %s245, [#allocation9], 128, 128, 8
        $region24: #{tpu_custom_call.1} parent=11 // pred_fallthru
          _
        // Predicated region
        $region25: #{tpu_custom_call.1} parent=11 // pred_check
          %p251 = pneg %p131
        $region26: #{tpu_custom_call.1} parent=11 // pred_check_branch
          %253 = sbr.rel (%p251) target = $region28
        $region27: #{tpu_custom_call.1} parent=11 // pred_region
          _
        $region28: #{tpu_custom_call.1} parent=11 // pred_fallthru
          _
        // Predicated region
        $region29: #{tpu_custom_call.1} parent=11 // pred_check
          %p254 = pneg %p152
        $region30: #{tpu_custom_call.1} parent=11 // pred_check_branch
          %256 = sbr.rel (%p254) target = $region32
        $region31: #{tpu_custom_call.1} parent=11 // pred_region
          %s258 = ssub.s32 2048, 2048
          %259 = vsyncadd [#allocation9], %s258
          %s260 = sshll.u32 [#allocation10], 4
          %s261 = int_to_ptr.vmem [resolvable:$true] %s260
          %266 = dma.hbm_to_vmem [thread:$0]  %s5, 2048, %s261, [#allocation9], 64, 64, 4
        $region32: #{tpu_custom_call.1} parent=11 // pred_fallthru
          _
        // Predicated region
        $region33: #{tpu_custom_call.1} parent=11 // pred_check
          %p267 = pneg %p173
        $region34: #{tpu_custom_call.1} parent=11 // pred_check_branch
          %269 = sbr.rel (%p267) target = $region36
        $region35: #{tpu_custom_call.1} parent=11 // pred_region
          _
        $region36: #{tpu_custom_call.1} parent=11 // pred_fallthru
          _
      $region12: #{tpu_custom_call.1} parent=5 // pred_fallthru
        _
      %p270 = scmp.lt.s32.totalorder %s21, 2
      // Predicated region
      $region37: #{tpu_custom_call.1} parent=5 // pred_check
        %p271 = pneg %p270
      $region38: #{tpu_custom_call.1} parent=5 // pred_check_branch
        %273 = sbr.rel (%p271) target = $region40
      $region39: #{tpu_custom_call.1} parent=5 // pred_region
        // Predicated region
        $region41: #{tpu_custom_call.1} parent=39 // pred_check
          %p274 = pneg %p41
        $region42: #{tpu_custom_call.1} parent=39 // pred_check_branch
          %276 = sbr.rel (%p274) target = $region44
        $region43: #{tpu_custom_call.1} parent=39 // pred_region
          %s277 = sand.u32 %s31, 1
          %s278 = scalar_lea.sflag [#allocation3], %s277
          %s279 = sand.u32 %s31, 1
          %s280 = smul.addr %s279, 64
          %s281 = scalar_lea.vmem [#allocation2], %s280
          %s282 = smul.u32 2, %s21
          %s284 = ssub.s32 1024, 1024
          %285 = vsyncadd %s278, %s284
          %s286 = smul.addr %s282, 4
          %s287 = smul.addr %s286, 128
          %s288 = scalar_lea.hbm %s0, %s287
          %s289 = sshll.u32 %s281, 4
          %s290 = int_to_ptr.vmem [resolvable:$true] %s289
          %295 = dma.hbm_to_vmem [thread:$0]  %s288, 1024, %s290, %s278, 512, 512, 32
        $region44: #{tpu_custom_call.1} parent=39 // pred_fallthru
          _
      $region40: #{tpu_custom_call.1} parent=5 // pred_fallthru
        _
      %p296 = scmp.le.s32.totalorder 1, %s21
      %p297 = scmp.lt.s32.totalorder %s21, 3
      %p298 = pnand %p296, %p297
      %p299 = pneg %p298
      // Predicated region
      $region45: #{tpu_custom_call.1} parent=5 // pred_check
        _
      $region46: #{tpu_custom_call.1} parent=5 // pred_check_branch
        %301 = sbr.rel (%p298) target = $region48
      $region47: #{tpu_custom_call.1} parent=5 // pred_region
        %s302 = ssub.s32 %s21, 1
        %s303 = sand.u32 %s34, 1
        %s304 = scalar_lea.sflag [#allocation3], %s303
        %s305 = sand.u32 %s34, 1
        %s306 = smul.addr %s305, 64
        %s307 = scalar_lea.vmem [#allocation2], %s306
        // Predicated region
        $region49: #{tpu_custom_call.1} parent=47 // pred_check
          %p308 = pneg %p47
        $region50: #{tpu_custom_call.1} parent=47 // pred_check_branch
          %310 = sbr.rel (%p308) target = $region52
        $region51: #{tpu_custom_call.1} parent=47 // pred_region
          %311 = dma.done %s304, 1024
        $region52: #{tpu_custom_call.1} parent=47 // pred_fallthru
          _
        // Predicated region
        $region53: #{tpu_custom_call.1} parent=47 // pred_check
          %p312 = pneg %p68
        $region54: #{tpu_custom_call.1} parent=47 // pred_check_branch
          %314 = sbr.rel (%p312) target = $region56
        $region55: #{tpu_custom_call.1} parent=47 // pred_region
          %315 = dma.done [#allocation6], 32768
        $region56: #{tpu_custom_call.1} parent=47 // pred_fallthru
          _
        // Predicated region
        $region57: #{tpu_custom_call.1} parent=47 // pred_check
          %p316 = pneg %p89
        $region58: #{tpu_custom_call.1} parent=47 // pred_check_branch
          %318 = sbr.rel (%p316) target = $region60
        $region59: #{tpu_custom_call.1} parent=47 // pred_region
          %319 = dma.done [#allocation6], 128
        $region60: #{tpu_custom_call.1} parent=47 // pred_fallthru
          _
        // Predicated region
        $region61: #{tpu_custom_call.1} parent=47 // pred_check
          %p320 = pneg %p110
        $region62: #{tpu_custom_call.1} parent=47 // pred_check_branch
          %322 = sbr.rel (%p320) target = $region64
        $region63: #{tpu_custom_call.1} parent=47 // pred_region
          %323 = dma.done [#allocation9], 16384
        $region64: #{tpu_custom_call.1} parent=47 // pred_fallthru
          _
        // Predicated region
        $region65: #{tpu_custom_call.1} parent=47 // pred_check
          %p324 = pneg %p152
        $region66: #{tpu_custom_call.1} parent=47 // pred_check_branch
          %326 = sbr.rel (%p324) target = $region68
        $region67: #{tpu_custom_call.1} parent=47 // pred_region
          %327 = dma.done [#allocation9], 2048
        $region68: #{tpu_custom_call.1} parent=47 // pred_fallthru
          _
        %s328 = sand.u32 %s34, 1
        %s329 = scalar_lea.sflag [#allocation3], %s328
        %s330 = sand.u32 %s34, 1
        %s331 = smul.addr %s330, 64
        %s332 = scalar_lea.vmem [#allocation2], %s331
        %p333 = pneg %p47
        %p334 = pneg %p44
        %p335 = pneg %p68
        %p336 = pneg %p65
        %p337 = pneg %p89
        %p338 = pneg %p86
        %p339 = pneg %p110
        %p340 = pneg %p107
        %p341 = pneg %p131
        %p342 = pneg %p128
        %p343 = pneg %p152
        %p344 = pneg %p149
        %p345 = pneg %p173
        %p346 = pneg %p170
        %p347 = pneg %p199
        %p348 = pneg %p196
        %s349 = sand.u32 %s186, 1
        %s350 = scalar_lea.sflag [#allocation4], %s349
        %s351 = sand.u32 %s186, 1
        %s352 = smul.addr %s351, 16
        %s353 = scalar_lea.vmem [#allocation11], %s352
        %s354 = smul.u32 2, %s26
        %s355 = smul.u32 2, %s26
        %v357 = vld [vmem:[%s307] sm:$0xff]
        %v358 = vld [vmem:[%s307 + $0x8] sm:$0xff]
        %v359 = vld [vmem:[%s307 + $0x10] sm:$0xff]
        %v360 = vld [vmem:[%s307 + $0x18] sm:$0xff]
        %v361 = vld [vmem:[%s307 + $0x20] sm:$0xff]
        %v362 = vld [vmem:[%s307 + $0x28] sm:$0xff]
        %v363 = vld [vmem:[%s307 + $0x30] sm:$0xff]
        %v364 = vld [vmem:[%s307 + $0x38] sm:$0xff]
        %v365 = vpack.c.bf16 %v361, %v357
        %v366 = vpack.c.bf16 %v362, %v358
        %v367 = vpack.c.bf16 %v363, %v359
        %v368 = vpack.c.bf16 %v364, %v360
        %v369 = vld [vmem:[#allocation5] sm:$0xff]
        %v370 = vld [vmem:[#allocation5 + $0x8] sm:$0xff]
        %v371 = vld [vmem:[#allocation5 + $0x10] sm:$0xff]
        %v372 = vld [vmem:[#allocation5 + $0x18] sm:$0xff]
        %v373 = vld [vmem:[#allocation5 + $0x20] sm:$0xff]
        %v374 = vld [vmem:[#allocation5 + $0x28] sm:$0xff]
        %v375 = vld [vmem:[#allocation5 + $0x30] sm:$0xff]
        %v376 = vld [vmem:[#allocation5 + $0x38] sm:$0xff]
        %v377 = vld [vmem:[#allocation5 + $0x40] sm:$0xff]
        %v378 = vld [vmem:[#allocation5 + $0x48] sm:$0xff]
        %v379 = vld [vmem:[#allocation5 + $0x50] sm:$0xff]
        %v380 = vld [vmem:[#allocation5 + $0x58] sm:$0xff]
        %v381 = vld [vmem:[#allocation5 + $0x60] sm:$0xff]
        %v382 = vld [vmem:[#allocation5 + $0x68] sm:$0xff]
        %v383 = vld [vmem:[#allocation5 + $0x70] sm:$0xff]
        %v384 = vld [vmem:[#allocation5 + $0x78] sm:$0xff]
        %v385 = vld [vmem:[#allocation5 + $0x80] sm:$0xff]
        %v386 = vld [vmem:[#allocation5 + $0x88] sm:$0xff]
        %v387 = vld [vmem:[#allocation5 + $0x90] sm:$0xff]
        %v388 = vld [vmem:[#allocation5 + $0x98] sm:$0xff]
        %v389 = vld [vmem:[#allocation5 + $0xa0] sm:$0xff]
        %v390 = vld [vmem:[#allocation5 + $0xa8] sm:$0xff]
        %v391 = vld [vmem:[#allocation5 + $0xb0] sm:$0xff]
        %v392 = vld [vmem:[#allocation5 + $0xb8] sm:$0xff]
        %v393 = vld [vmem:[#allocation5 + $0xc0] sm:$0xff]
        %v394 = vld [vmem:[#allocation5 + $0xc8] sm:$0xff]
        %v395 = vld [vmem:[#allocation5 + $0xd0] sm:$0xff]
        %v396 = vld [vmem:[#allocation5 + $0xd8] sm:$0xff]
        %v397 = vld [vmem:[#allocation5 + $0xe0] sm:$0xff]
        %v398 = vld [vmem:[#allocation5 + $0xe8] sm:$0xff]
        %v399 = vld [vmem:[#allocation5 + $0xf0] sm:$0xff]
        %v400 = vld [vmem:[#allocation5 + $0xf8] sm:$0xff]
        %v401 = vld [vmem:[#allocation5 + $0x100] sm:$0xff]
        %v402 = vld [vmem:[#allocation5 + $0x108] sm:$0xff]
        %v403 = vld [vmem:[#allocation5 + $0x110] sm:$0xff]
        %v404 = vld [vmem:[#allocation5 + $0x118] sm:$0xff]
        %v405 = vld [vmem:[#allocation5 + $0x120] sm:$0xff]
        %v406 = vld [vmem:[#allocation5 + $0x128] sm:$0xff]
        %v407 = vld [vmem:[#allocation5 + $0x130] sm:$0xff]
        %v408 = vld [vmem:[#allocation5 + $0x138] sm:$0xff]
        %v409 = vld [vmem:[#allocation5 + $0x140] sm:$0xff]
        %v410 = vld [vmem:[#allocation5 + $0x148] sm:$0xff]
        %v411 = vld [vmem:[#allocation5 + $0x150] sm:$0xff]
        %v412 = vld [vmem:[#allocation5 + $0x158] sm:$0xff]
        %v413 = vld [vmem:[#allocation5 + $0x160] sm:$0xff]
        %v414 = vld [vmem:[#allocation5 + $0x168] sm:$0xff]
        %v415 = vld [vmem:[#allocation5 + $0x170] sm:$0xff]
        %v416 = vld [vmem:[#allocation5 + $0x178] sm:$0xff]
        %v417 = vld [vmem:[#allocation5 + $0x180] sm:$0xff]
        %v418 = vld [vmem:[#allocation5 + $0x188] sm:$0xff]
        %v419 = vld [vmem:[#allocation5 + $0x190] sm:$0xff]
        %v420 = vld [vmem:[#allocation5 + $0x198] sm:$0xff]
        %v421 = vld [vmem:[#allocation5 + $0x1a0] sm:$0xff]
        %v422 = vld [vmem:[#allocation5 + $0x1a8] sm:$0xff]
        %v423 = vld [vmem:[#allocation5 + $0x1b0] sm:$0xff]
        %v424 = vld [vmem:[#allocation5 + $0x1b8] sm:$0xff]
        %v425 = vld [vmem:[#allocation5 + $0x1c0] sm:$0xff]
        %v426 = vld [vmem:[#allocation5 + $0x1c8] sm:$0xff]
        %v427 = vld [vmem:[#allocation5 + $0x1d0] sm:$0xff]
        %v428 = vld [vmem:[#allocation5 + $0x1d8] sm:$0xff]
        %v429 = vld [vmem:[#allocation5 + $0x1e0] sm:$0xff]
        %v430 = vld [vmem:[#allocation5 + $0x1e8] sm:$0xff]
        %v431 = vld [vmem:[#allocation5 + $0x1f0] sm:$0xff]
        %v432 = vld [vmem:[#allocation5 + $0x1f8] sm:$0xff]
        %v433 = vld [vmem:[#allocation5 + $0x200] sm:$0xff]
        %v434 = vld [vmem:[#allocation5 + $0x208] sm:$0xff]
        %v435 = vld [vmem:[#allocation5 + $0x210] sm:$0xff]
        %v436 = vld [vmem:[#allocation5 + $0x218] sm:$0xff]
        %v437 = vld [vmem:[#allocation5 + $0x220] sm:$0xff]
        %v438 = vld [vmem:[#allocation5 + $0x228] sm:$0xff]
        %v439 = vld [vmem:[#allocation5 + $0x230] sm:$0xff]
        %v440 = vld [vmem:[#allocation5 + $0x238] sm:$0xff]
        %v441 = vld [vmem:[#allocation5 + $0x240] sm:$0xff]
        %v442 = vld [vmem:[#allocation5 + $0x248] sm:$0xff]
        %v443 = vld [vmem:[#allocation5 + $0x250] sm:$0xff]
        %v444 = vld [vmem:[#allocation5 + $0x258] sm:$0xff]
        %v445 = vld [vmem:[#allocation5 + $0x260] sm:$0xff]
        %v446 = vld [vmem:[#allocation5 + $0x268] sm:$0xff]
        %v447 = vld [vmem:[#allocation5 + $0x270] sm:$0xff]
        %v448 = vld [vmem:[#allocation5 + $0x278] sm:$0xff]
        %v449 = vld [vmem:[#allocation5 + $0x280] sm:$0xff]
        %v450 = vld [vmem:[#allocation5 + $0x288] sm:$0xff]
        %v451 = vld [vmem:[#allocation5 + $0x290] sm:$0xff]
        %v452 = vld [vmem:[#allocation5 + $0x298] sm:$0xff]
        %v453 = vld [vmem:[#allocation5 + $0x2a0] sm:$0xff]
        %v454 = vld [vmem:[#allocation5 + $0x2a8] sm:$0xff]
        %v455 = vld [vmem:[#allocation5 + $0x2b0] sm:$0xff]
        %v456 = vld [vmem:[#allocation5 + $0x2b8] sm:$0xff]
        %v457 = vld [vmem:[#allocation5 + $0x2c0] sm:$0xff]
        %v458 = vld [vmem:[#allocation5 + $0x2c8] sm:$0xff]
        %v459 = vld [vmem:[#allocation5 + $0x2d0] sm:$0xff]
        %v460 = vld [vmem:[#allocation5 + $0x2d8] sm:$0xff]
        %v461 = vld [vmem:[#allocation5 + $0x2e0] sm:$0xff]
        %v462 = vld [vmem:[#allocation5 + $0x2e8] sm:$0xff]
        %v463 = vld [vmem:[#allocation5 + $0x2f0] sm:$0xff]
        %v464 = vld [vmem:[#allocation5 + $0x2f8] sm:$0xff]
        %v465 = vld [vmem:[#allocation5 + $0x300] sm:$0xff]
        %v466 = vld [vmem:[#allocation5 + $0x308] sm:$0xff]
        %v467 = vld [vmem:[#allocation5 + $0x310] sm:$0xff]
        %v468 = vld [vmem:[#allocation5 + $0x318] sm:$0xff]
        %v469 = vld [vmem:[#allocation5 + $0x320] sm:$0xff]
        %v470 = vld [vmem:[#allocation5 + $0x328] sm:$0xff]
        %v471 = vld [vmem:[#allocation5 + $0x330] sm:$0xff]
        %v472 = vld [vmem:[#allocation5 + $0x338] sm:$0xff]
        %v473 = vld [vmem:[#allocation5 + $0x340] sm:$0xff]
        %v474 = vld [vmem:[#allocation5 + $0x348] sm:$0xff]
        %v475 = vld [vmem:[#allocation5 + $0x350] sm:$0xff]
        %v476 = vld [vmem:[#allocation5 + $0x358] sm:$0xff]
        %v477 = vld [vmem:[#allocation5 + $0x360] sm:$0xff]
        %v478 = vld [vmem:[#allocation5 + $0x368] sm:$0xff]
        %v479 = vld [vmem:[#allocation5 + $0x370] sm:$0xff]
        %v480 = vld [vmem:[#allocation5 + $0x378] sm:$0xff]
        %v481 = vld [vmem:[#allocation5 + $0x380] sm:$0xff]
        %v482 = vld [vmem:[#allocation5 + $0x388] sm:$0xff]
        %v483 = vld [vmem:[#allocation5 + $0x390] sm:$0xff]
        %v484 = vld [vmem:[#allocation5 + $0x398] sm:$0xff]
        %v485 = vld [vmem:[#allocation5 + $0x3a0] sm:$0xff]
        %v486 = vld [vmem:[#allocation5 + $0x3a8] sm:$0xff]
        %v487 = vld [vmem:[#allocation5 + $0x3b0] sm:$0xff]
        %v488 = vld [vmem:[#allocation5 + $0x3b8] sm:$0xff]
        %v489 = vld [vmem:[#allocation5 + $0x3c0] sm:$0xff]
        %v490 = vld [vmem:[#allocation5 + $0x3c8] sm:$0xff]
        %v491 = vld [vmem:[#allocation5 + $0x3d0] sm:$0xff]
        %v492 = vld [vmem:[#allocation5 + $0x3d8] sm:$0xff]
        %v493 = vld [vmem:[#allocation5 + $0x3e0] sm:$0xff]
        %v494 = vld [vmem:[#allocation5 + $0x3e8] sm:$0xff]
        %v495 = vld [vmem:[#allocation5 + $0x3f0] sm:$0xff]
        %v496 = vld [vmem:[#allocation5 + $0x3f8] sm:$0xff]
        %v497 = vld [vmem:[#allocation5 + $0x400] sm:$0xff]
        %v498 = vld [vmem:[#allocation5 + $0x408] sm:$0xff]
        %v499 = vld [vmem:[#allocation5 + $0x410] sm:$0xff]
        %v500 = vld [vmem:[#allocation5 + $0x418] sm:$0xff]
        %v501 = vld [vmem:[#allocation5 + $0x420] sm:$0xff]
        %v502 = vld [vmem:[#allocation5 + $0x428] sm:$0xff]
        %v503 = vld [vmem:[#allocation5 + $0x430] sm:$0xff]
        %v504 = vld [vmem:[#allocation5 + $0x438] sm:$0xff]
        %v505 = vld [vmem:[#allocation5 + $0x440] sm:$0xff]
        %v506 = vld [vmem:[#allocation5 + $0x448] sm:$0xff]
        %v507 = vld [vmem:[#allocation5 + $0x450] sm:$0xff]
        %v508 = vld [vmem:[#allocation5 + $0x458] sm:$0xff]
        %v509 = vld [vmem:[#allocation5 + $0x460] sm:$0xff]
        %v510 = vld [vmem:[#allocation5 + $0x468] sm:$0xff]
        %v511 = vld [vmem:[#allocation5 + $0x470] sm:$0xff]
        %v512 = vld [vmem:[#allocation5 + $0x478] sm:$0xff]
        %v513 = vld [vmem:[#allocation5 + $0x480] sm:$0xff]
        %v514 = vld [vmem:[#allocation5 + $0x488] sm:$0xff]
        %v515 = vld [vmem:[#allocation5 + $0x490] sm:$0xff]
        %v516 = vld [vmem:[#allocation5 + $0x498] sm:$0xff]
        %v517 = vld [vmem:[#allocation5 + $0x4a0] sm:$0xff]
        %v518 = vld [vmem:[#allocation5 + $0x4a8] sm:$0xff]
        %v519 = vld [vmem:[#allocation5 + $0x4b0] sm:$0xff]
        %v520 = vld [vmem:[#allocation5 + $0x4b8] sm:$0xff]
        %v521 = vld [vmem:[#allocation5 + $0x4c0] sm:$0xff]
        %v522 = vld [vmem:[#allocation5 + $0x4c8] sm:$0xff]
        %v523 = vld [vmem:[#allocation5 + $0x4d0] sm:$0xff]
        %v524 = vld [vmem:[#allocation5 + $0x4d8] sm:$0xff]
        %v525 = vld [vmem:[#allocation5 + $0x4e0] sm:$0xff]
        %v526 = vld [vmem:[#allocation5 + $0x4e8] sm:$0xff]
        %v527 = vld [vmem:[#allocation5 + $0x4f0] sm:$0xff]
        %v528 = vld [vmem:[#allocation5 + $0x4f8] sm:$0xff]
        %v529 = vld [vmem:[#allocation5 + $0x500] sm:$0xff]
        %v530 = vld [vmem:[#allocation5 + $0x508] sm:$0xff]
        %v531 = vld [vmem:[#allocation5 + $0x510] sm:$0xff]
        %v532 = vld [vmem:[#allocation5 + $0x518] sm:$0xff]
        %v533 = vld [vmem:[#allocation5 + $0x520] sm:$0xff]
        %v534 = vld [vmem:[#allocation5 + $0x528] sm:$0xff]
        %v535 = vld [vmem:[#allocation5 + $0x530] sm:$0xff]
        %v536 = vld [vmem:[#allocation5 + $0x538] sm:$0xff]
        %v537 = vld [vmem:[#allocation5 + $0x540] sm:$0xff]
        %v538 = vld [vmem:[#allocation5 + $0x548] sm:$0xff]
        %v539 = vld [vmem:[#allocation5 + $0x550] sm:$0xff]
        %v540 = vld [vmem:[#allocation5 + $0x558] sm:$0xff]
        %v541 = vld [vmem:[#allocation5 + $0x560] sm:$0xff]
        %v542 = vld [vmem:[#allocation5 + $0x568] sm:$0xff]
        %v543 = vld [vmem:[#allocation5 + $0x570] sm:$0xff]
        %v544 = vld [vmem:[#allocation5 + $0x578] sm:$0xff]
        %v545 = vld [vmem:[#allocation5 + $0x580] sm:$0xff]
        %v546 = vld [vmem:[#allocation5 + $0x588] sm:$0xff]
        %v547 = vld [vmem:[#allocation5 + $0x590] sm:$0xff]
        %v548 = vld [vmem:[#allocation5 + $0x598] sm:$0xff]
        %v549 = vld [vmem:[#allocation5 + $0x5a0] sm:$0xff]
        %v550 = vld [vmem:[#allocation5 + $0x5a8] sm:$0xff]
        %v551 = vld [vmem:[#allocation5 + $0x5b0] sm:$0xff]
        %v552 = vld [vmem:[#allocation5 + $0x5b8] sm:$0xff]
        %v553 = vld [vmem:[#allocation5 + $0x5c0] sm:$0xff]
        %v554 = vld [vmem:[#allocation5 + $0x5c8] sm:$0xff]
        %v555 = vld [vmem:[#allocation5 + $0x5d0] sm:$0xff]
        %v556 = vld [vmem:[#allocation5 + $0x5d8] sm:$0xff]
        %v557 = vld [vmem:[#allocation5 + $0x5e0] sm:$0xff]
        %v558 = vld [vmem:[#allocation5 + $0x5e8] sm:$0xff]
        %v559 = vld [vmem:[#allocation5 + $0x5f0] sm:$0xff]
        %v560 = vld [vmem:[#allocation5 + $0x5f8] sm:$0xff]
        %v561 = vld [vmem:[#allocation5 + $0x600] sm:$0xff]
        %v562 = vld [vmem:[#allocation5 + $0x608] sm:$0xff]
        %v563 = vld [vmem:[#allocation5 + $0x610] sm:$0xff]
        %v564 = vld [vmem:[#allocation5 + $0x618] sm:$0xff]
        %v565 = vld [vmem:[#allocation5 + $0x620] sm:$0xff]
        %v566 = vld [vmem:[#allocation5 + $0x628] sm:$0xff]
        %v567 = vld [vmem:[#allocation5 + $0x630] sm:$0xff]
        %v568 = vld [vmem:[#allocation5 + $0x638] sm:$0xff]
        %v569 = vld [vmem:[#allocation5 + $0x640] sm:$0xff]
        %v570 = vld [vmem:[#allocation5 + $0x648] sm:$0xff]
        %v571 = vld [vmem:[#allocation5 + $0x650] sm:$0xff]
        %v572 = vld [vmem:[#allocation5 + $0x658] sm:$0xff]
        %v573 = vld [vmem:[#allocation5 + $0x660] sm:$0xff]
        %v574 = vld [vmem:[#allocation5 + $0x668] sm:$0xff]
        %v575 = vld [vmem:[#allocation5 + $0x670] sm:$0xff]
        %v576 = vld [vmem:[#allocation5 + $0x678] sm:$0xff]
        %v577 = vld [vmem:[#allocation5 + $0x680] sm:$0xff]
        %v578 = vld [vmem:[#allocation5 + $0x688] sm:$0xff]
        %v579 = vld [vmem:[#allocation5 + $0x690] sm:$0xff]
        %v580 = vld [vmem:[#allocation5 + $0x698] sm:$0xff]
        %v581 = vld [vmem:[#allocation5 + $0x6a0] sm:$0xff]
        %v582 = vld [vmem:[#allocation5 + $0x6a8] sm:$0xff]
        %v583 = vld [vmem:[#allocation5 + $0x6b0] sm:$0xff]
        %v584 = vld [vmem:[#allocation5 + $0x6b8] sm:$0xff]
        %v585 = vld [vmem:[#allocation5 + $0x6c0] sm:$0xff]
        %v586 = vld [vmem:[#allocation5 + $0x6c8] sm:$0xff]
        %v587 = vld [vmem:[#allocation5 + $0x6d0] sm:$0xff]
        %v588 = vld [vmem:[#allocation5 + $0x6d8] sm:$0xff]
        %v589 = vld [vmem:[#allocation5 + $0x6e0] sm:$0xff]
        %v590 = vld [vmem:[#allocation5 + $0x6e8] sm:$0xff]
        %v591 = vld [vmem:[#allocation5 + $0x6f0] sm:$0xff]
        %v592 = vld [vmem:[#allocation5 + $0x6f8] sm:$0xff]
        %v593 = vld [vmem:[#allocation5 + $0x700] sm:$0xff]
        %v594 = vld [vmem:[#allocation5 + $0x708] sm:$0xff]
        %v595 = vld [vmem:[#allocation5 + $0x710] sm:$0xff]
        %v596 = vld [vmem:[#allocation5 + $0x718] sm:$0xff]
        %v597 = vld [vmem:[#allocation5 + $0x720] sm:$0xff]
        %v598 = vld [vmem:[#allocation5 + $0x728] sm:$0xff]
        %v599 = vld [vmem:[#allocation5 + $0x730] sm:$0xff]
        %v600 = vld [vmem:[#allocation5 + $0x738] sm:$0xff]
        %v601 = vld [vmem:[#allocation5 + $0x740] sm:$0xff]
        %v602 = vld [vmem:[#allocation5 + $0x748] sm:$0xff]
        %v603 = vld [vmem:[#allocation5 + $0x750] sm:$0xff]
        %v604 = vld [vmem:[#allocation5 + $0x758] sm:$0xff]
        %v605 = vld [vmem:[#allocation5 + $0x760] sm:$0xff]
        %v606 = vld [vmem:[#allocation5 + $0x768] sm:$0xff]
        %v607 = vld [vmem:[#allocation5 + $0x770] sm:$0xff]
        %v608 = vld [vmem:[#allocation5 + $0x778] sm:$0xff]
        %v609 = vld [vmem:[#allocation5 + $0x780] sm:$0xff]
        %v610 = vld [vmem:[#allocation5 + $0x788] sm:$0xff]
        %v611 = vld [vmem:[#allocation5 + $0x790] sm:$0xff]
        %v612 = vld [vmem:[#allocation5 + $0x798] sm:$0xff]
        %v613 = vld [vmem:[#allocation5 + $0x7a0] sm:$0xff]
        %v614 = vld [vmem:[#allocation5 + $0x7a8] sm:$0xff]
        %v615 = vld [vmem:[#allocation5 + $0x7b0] sm:$0xff]
        %v616 = vld [vmem:[#allocation5 + $0x7b8] sm:$0xff]
        %v617 = vld [vmem:[#allocation5 + $0x7c0] sm:$0xff]
        %v618 = vld [vmem:[#allocation5 + $0x7c8] sm:$0xff]
        %v619 = vld [vmem:[#allocation5 + $0x7d0] sm:$0xff]
        %v620 = vld [vmem:[#allocation5 + $0x7d8] sm:$0xff]
        %v621 = vld [vmem:[#allocation5 + $0x7e0] sm:$0xff]
        %v622 = vld [vmem:[#allocation5 + $0x7e8] sm:$0xff]
        %v623 = vld [vmem:[#allocation5 + $0x7f0] sm:$0xff]
        %v624 = vld [vmem:[#allocation5 + $0x7f8] sm:$0xff]
        %v625 = vld [vmem:[#allocation7] sm:$0xff]
        %v627 = vlaneseq
        %v628 = vshrl.u32 %v627, 7
        %v629 = vsub.s32 0, %v628
        %v630 = vrot.slane %v625, %v629
        %v631 = vlaneseq
        %v632 = vshrl.u32 %v631, 7
        %v633 = vsub.s32 1, %v632
        %v634 = vrot.slane %v625, %v633
        %v635 = vlaneseq
        %v636 = vshrl.u32 %v635, 7
        %v637 = vsub.s32 2, %v636
        %v638 = vrot.slane %v625, %v637
        %v639 = vlaneseq
        %v640 = vshrl.u32 %v639, 7
        %v641 = vsub.s32 3, %v640
        %v642 = vrot.slane %v625, %v641
        %v643 = vlaneseq
        %v644 = vshrl.u32 %v643, 7
        %v645 = vsub.s32 4, %v644
        %v646 = vrot.slane %v625, %v645
        %v647 = vlaneseq
        %v648 = vshrl.u32 %v647, 7
        %v649 = vsub.s32 5, %v648
        %v650 = vrot.slane %v625, %v649
        %v651 = vlaneseq
        %v652 = vshrl.u32 %v651, 7
        %v653 = vsub.s32 6, %v652
        %v654 = vrot.slane %v625, %v653
        %v655 = vlaneseq
        %v656 = vshrl.u32 %v655, 7
        %v657 = vsub.s32 7, %v656
        %v658 = vrot.slane %v625, %v657
        %v923 = vunpack.c.l.b16 %v369
        %v924 = vunpack.c.h.b16 %v369
        %v925 = vunpack.c.l.b16 %v370
        %v926 = vunpack.c.h.b16 %v370
        %v927 = vunpack.c.l.b16 %v371
        %v928 = vunpack.c.h.b16 %v371
        %v929 = vunpack.c.l.b16 %v372
        %v930 = vunpack.c.h.b16 %v372
        %v931 = vunpack.c.l.b16 %v373
        %v932 = vunpack.c.h.b16 %v373
        %v933 = vunpack.c.l.b16 %v374
        %v934 = vunpack.c.h.b16 %v374
        %v935 = vunpack.c.l.b16 %v375
        %v936 = vunpack.c.h.b16 %v375
        %v937 = vunpack.c.l.b16 %v376
        %v938 = vunpack.c.h.b16 %v376
        %v939 = vunpack.c.l.b16 %v377
        %v940 = vunpack.c.h.b16 %v377
        %v941 = vunpack.c.l.b16 %v378
        %v942 = vunpack.c.h.b16 %v378
        %v943 = vunpack.c.l.b16 %v379
        %v944 = vunpack.c.h.b16 %v379
        %v945 = vunpack.c.l.b16 %v380
        %v946 = vunpack.c.h.b16 %v380
        %v947 = vunpack.c.l.b16 %v381
        %v948 = vunpack.c.h.b16 %v381
        %v949 = vunpack.c.l.b16 %v382
        %v950 = vunpack.c.h.b16 %v382
        %v951 = vunpack.c.l.b16 %v383
        %v952 = vunpack.c.h.b16 %v383
        %v953 = vunpack.c.l.b16 %v384
        %v954 = vunpack.c.h.b16 %v384
        %v955 = vunpack.c.l.b16 %v385
        %v956 = vunpack.c.h.b16 %v385
        %v957 = vunpack.c.l.b16 %v386
        %v958 = vunpack.c.h.b16 %v386
        %v959 = vunpack.c.l.b16 %v387
        %v960 = vunpack.c.h.b16 %v387
        %v961 = vunpack.c.l.b16 %v388
        %v962 = vunpack.c.h.b16 %v388
        %v963 = vunpack.c.l.b16 %v389
        %v964 = vunpack.c.h.b16 %v389
        %v965 = vunpack.c.l.b16 %v390
        %v966 = vunpack.c.h.b16 %v390
        %v967 = vunpack.c.l.b16 %v391
        %v968 = vunpack.c.h.b16 %v391
        %v969 = vunpack.c.l.b16 %v392
        %v970 = vunpack.c.h.b16 %v392
        %v971 = vunpack.c.l.b16 %v393
        %v972 = vunpack.c.h.b16 %v393
        %v973 = vunpack.c.l.b16 %v394
        %v974 = vunpack.c.h.b16 %v394
        %v975 = vunpack.c.l.b16 %v395
        %v976 = vunpack.c.h.b16 %v395
        %v977 = vunpack.c.l.b16 %v396
        %v978 = vunpack.c.h.b16 %v396
        %v979 = vunpack.c.l.b16 %v397
        %v980 = vunpack.c.h.b16 %v397
        %v981 = vunpack.c.l.b16 %v398
        %v982 = vunpack.c.h.b16 %v398
        %v983 = vunpack.c.l.b16 %v399
        %v984 = vunpack.c.h.b16 %v399
        %v985 = vunpack.c.l.b16 %v400
        %v986 = vunpack.c.h.b16 %v400
        %v987 = vunpack.c.l.b16 %v401
        %v988 = vunpack.c.h.b16 %v401
        %v989 = vunpack.c.l.b16 %v402
        %v990 = vunpack.c.h.b16 %v402
        %v991 = vunpack.c.l.b16 %v403
        %v992 = vunpack.c.h.b16 %v403
        %v993 = vunpack.c.l.b16 %v404
        %v994 = vunpack.c.h.b16 %v404
        %v995 = vunpack.c.l.b16 %v405
        %v996 = vunpack.c.h.b16 %v405
        %v997 = vunpack.c.l.b16 %v406
        %v998 = vunpack.c.h.b16 %v406
        %v999 = vunpack.c.l.b16 %v407
        %v1000 = vunpack.c.h.b16 %v407
        %v1001 = vunpack.c.l.b16 %v408
        %v1002 = vunpack.c.h.b16 %v408
        %v1003 = vunpack.c.l.b16 %v409
        %v1004 = vunpack.c.h.b16 %v409
        %v1005 = vunpack.c.l.b16 %v410
        %v1006 = vunpack.c.h.b16 %v410
        %v1007 = vunpack.c.l.b16 %v411
        %v1008 = vunpack.c.h.b16 %v411
        %v1009 = vunpack.c.l.b16 %v412
        %v1010 = vunpack.c.h.b16 %v412
        %v1011 = vunpack.c.l.b16 %v413
        %v1012 = vunpack.c.h.b16 %v413
        %v1013 = vunpack.c.l.b16 %v414
        %v1014 = vunpack.c.h.b16 %v414
        %v1015 = vunpack.c.l.b16 %v415
        %v1016 = vunpack.c.h.b16 %v415
        %v1017 = vunpack.c.l.b16 %v416
        %v1018 = vunpack.c.h.b16 %v416
        %v1019 = vunpack.c.l.b16 %v417
        %v1020 = vunpack.c.h.b16 %v417
        %v1021 = vunpack.c.l.b16 %v418
        %v1022 = vunpack.c.h.b16 %v418
        %v1023 = vunpack.c.l.b16 %v419
        %v1024 = vunpack.c.h.b16 %v419
        %v1025 = vunpack.c.l.b16 %v420
        %v1026 = vunpack.c.h.b16 %v420
        %v1027 = vunpack.c.l.b16 %v421
        %v1028 = vunpack.c.h.b16 %v421
        %v1029 = vunpack.c.l.b16 %v422
        %v1030 = vunpack.c.h.b16 %v422
        %v1031 = vunpack.c.l.b16 %v423
        %v1032 = vunpack.c.h.b16 %v423
        %v1033 = vunpack.c.l.b16 %v424
        %v1034 = vunpack.c.h.b16 %v424
        %v1035 = vunpack.c.l.b16 %v425
        %v1036 = vunpack.c.h.b16 %v425
        %v1037 = vunpack.c.l.b16 %v426
        %v1038 = vunpack.c.h.b16 %v426
        %v1039 = vunpack.c.l.b16 %v427
        %v1040 = vunpack.c.h.b16 %v427
        %v1041 = vunpack.c.l.b16 %v428
        %v1042 = vunpack.c.h.b16 %v428
        %v1043 = vunpack.c.l.b16 %v429
        %v1044 = vunpack.c.h.b16 %v429
        %v1045 = vunpack.c.l.b16 %v430
        %v1046 = vunpack.c.h.b16 %v430
        %v1047 = vunpack.c.l.b16 %v431
        %v1048 = vunpack.c.h.b16 %v431
        %v1049 = vunpack.c.l.b16 %v432
        %v1050 = vunpack.c.h.b16 %v432
        %v1051 = vunpack.c.l.b16 %v433
        %v1052 = vunpack.c.h.b16 %v433
        %v1053 = vunpack.c.l.b16 %v434
        %v1054 = vunpack.c.h.b16 %v434
        %v1055 = vunpack.c.l.b16 %v435
        %v1056 = vunpack.c.h.b16 %v435
        %v1057 = vunpack.c.l.b16 %v436
        %v1058 = vunpack.c.h.b16 %v436
        %v1059 = vunpack.c.l.b16 %v437
        %v1060 = vunpack.c.h.b16 %v437
        %v1061 = vunpack.c.l.b16 %v438
        %v1062 = vunpack.c.h.b16 %v438
        %v1063 = vunpack.c.l.b16 %v439
        %v1064 = vunpack.c.h.b16 %v439
        %v1065 = vunpack.c.l.b16 %v440
        %v1066 = vunpack.c.h.b16 %v440
        %v1067 = vunpack.c.l.b16 %v441
        %v1068 = vunpack.c.h.b16 %v441
        %v1069 = vunpack.c.l.b16 %v442
        %v1070 = vunpack.c.h.b16 %v442
        %v1071 = vunpack.c.l.b16 %v443
        %v1072 = vunpack.c.h.b16 %v443
        %v1073 = vunpack.c.l.b16 %v444
        %v1074 = vunpack.c.h.b16 %v444
        %v1075 = vunpack.c.l.b16 %v445
        %v1076 = vunpack.c.h.b16 %v445
        %v1077 = vunpack.c.l.b16 %v446
        %v1078 = vunpack.c.h.b16 %v446
        %v1079 = vunpack.c.l.b16 %v447
        %v1080 = vunpack.c.h.b16 %v447
        %v1081 = vunpack.c.l.b16 %v448
        %v1082 = vunpack.c.h.b16 %v448
        %v1083 = vunpack.c.l.b16 %v449
        %v1084 = vunpack.c.h.b16 %v449
        %v1085 = vunpack.c.l.b16 %v450
        %v1086 = vunpack.c.h.b16 %v450
        %v1087 = vunpack.c.l.b16 %v451
        %v1088 = vunpack.c.h.b16 %v451
        %v1089 = vunpack.c.l.b16 %v452
        %v1090 = vunpack.c.h.b16 %v452
        %v1091 = vunpack.c.l.b16 %v453
        %v1092 = vunpack.c.h.b16 %v453
        %v1093 = vunpack.c.l.b16 %v454
        %v1094 = vunpack.c.h.b16 %v454
        %v1095 = vunpack.c.l.b16 %v455
        %v1096 = vunpack.c.h.b16 %v455
        %v1097 = vunpack.c.l.b16 %v456
        %v1098 = vunpack.c.h.b16 %v456
        %v1099 = vunpack.c.l.b16 %v457
        %v1100 = vunpack.c.h.b16 %v457
        %v1101 = vunpack.c.l.b16 %v458
        %v1102 = vunpack.c.h.b16 %v458
        %v1103 = vunpack.c.l.b16 %v459
        %v1104 = vunpack.c.h.b16 %v459
        %v1105 = vunpack.c.l.b16 %v460
        %v1106 = vunpack.c.h.b16 %v460
        %v1107 = vunpack.c.l.b16 %v461
        %v1108 = vunpack.c.h.b16 %v461
        %v1109 = vunpack.c.l.b16 %v462
        %v1110 = vunpack.c.h.b16 %v462
        %v1111 = vunpack.c.l.b16 %v463
        %v1112 = vunpack.c.h.b16 %v463
        %v1113 = vunpack.c.l.b16 %v464
        %v1114 = vunpack.c.h.b16 %v464
        %v1115 = vunpack.c.l.b16 %v465
        %v1116 = vunpack.c.h.b16 %v465
        %v1117 = vunpack.c.l.b16 %v466
        %v1118 = vunpack.c.h.b16 %v466
        %v1119 = vunpack.c.l.b16 %v467
        %v1120 = vunpack.c.h.b16 %v467
        %v1121 = vunpack.c.l.b16 %v468
        %v1122 = vunpack.c.h.b16 %v468
        %v1123 = vunpack.c.l.b16 %v469
        %v1124 = vunpack.c.h.b16 %v469
        %v1125 = vunpack.c.l.b16 %v470
        %v1126 = vunpack.c.h.b16 %v470
        %v1127 = vunpack.c.l.b16 %v471
        %v1128 = vunpack.c.h.b16 %v471
        %v1129 = vunpack.c.l.b16 %v472
        %v1130 = vunpack.c.h.b16 %v472
        %v1131 = vunpack.c.l.b16 %v473
        %v1132 = vunpack.c.h.b16 %v473
        %v1133 = vunpack.c.l.b16 %v474
        %v1134 = vunpack.c.h.b16 %v474
        %v1135 = vunpack.c.l.b16 %v475
        %v1136 = vunpack.c.h.b16 %v475
        %v1137 = vunpack.c.l.b16 %v476
        %v1138 = vunpack.c.h.b16 %v476
        %v1139 = vunpack.c.l.b16 %v477
        %v1140 = vunpack.c.h.b16 %v477
        %v1141 = vunpack.c.l.b16 %v478
        %v1142 = vunpack.c.h.b16 %v478
        %v1143 = vunpack.c.l.b16 %v479
        %v1144 = vunpack.c.h.b16 %v479
        %v1145 = vunpack.c.l.b16 %v480
        %v1146 = vunpack.c.h.b16 %v480
        %v1147 = vunpack.c.l.b16 %v481
        %v1148 = vunpack.c.h.b16 %v481
        %v1149 = vunpack.c.l.b16 %v482
        %v1150 = vunpack.c.h.b16 %v482
        %v1151 = vunpack.c.l.b16 %v483
        %v1152 = vunpack.c.h.b16 %v483
        %v1153 = vunpack.c.l.b16 %v484
        %v1154 = vunpack.c.h.b16 %v484
        %v1155 = vunpack.c.l.b16 %v485
        %v1156 = vunpack.c.h.b16 %v485
        %v1157 = vunpack.c.l.b16 %v486
        %v1158 = vunpack.c.h.b16 %v486
        %v1159 = vunpack.c.l.b16 %v487
        %v1160 = vunpack.c.h.b16 %v487
        %v1161 = vunpack.c.l.b16 %v488
        %v1162 = vunpack.c.h.b16 %v488
        %v1163 = vunpack.c.l.b16 %v489
        %v1164 = vunpack.c.h.b16 %v489
        %v1165 = vunpack.c.l.b16 %v490
        %v1166 = vunpack.c.h.b16 %v490
        %v1167 = vunpack.c.l.b16 %v491
        %v1168 = vunpack.c.h.b16 %v491
        %v1169 = vunpack.c.l.b16 %v492
        %v1170 = vunpack.c.h.b16 %v492
        %v1171 = vunpack.c.l.b16 %v493
        %v1172 = vunpack.c.h.b16 %v493
        %v1173 = vunpack.c.l.b16 %v494
        %v1174 = vunpack.c.h.b16 %v494
        %v1175 = vunpack.c.l.b16 %v495
        %v1176 = vunpack.c.h.b16 %v495
        %v1177 = vunpack.c.l.b16 %v496
        %v1178 = vunpack.c.h.b16 %v496
        %v1179 = vunpack.c.l.b16 %v497
        %v1180 = vunpack.c.h.b16 %v497
        %v1181 = vunpack.c.l.b16 %v498
        %v1182 = vunpack.c.h.b16 %v498
        %v1183 = vunpack.c.l.b16 %v499
        %v1184 = vunpack.c.h.b16 %v499
        %v1185 = vunpack.c.l.b16 %v500
        %v1186 = vunpack.c.h.b16 %v500
        %v1187 = vunpack.c.l.b16 %v501
        %v1188 = vunpack.c.h.b16 %v501
        %v1189 = vunpack.c.l.b16 %v502
        %v1190 = vunpack.c.h.b16 %v502
        %v1191 = vunpack.c.l.b16 %v503
        %v1192 = vunpack.c.h.b16 %v503
        %v1193 = vunpack.c.l.b16 %v504
        %v1194 = vunpack.c.h.b16 %v504
        %v1195 = vunpack.c.l.b16 %v505
        %v1196 = vunpack.c.h.b16 %v505
        %v1197 = vunpack.c.l.b16 %v506
        %v1198 = vunpack.c.h.b16 %v506
        %v1199 = vunpack.c.l.b16 %v507
        %v1200 = vunpack.c.h.b16 %v507
        %v1201 = vunpack.c.l.b16 %v508
        %v1202 = vunpack.c.h.b16 %v508
        %v1203 = vunpack.c.l.b16 %v509
        %v1204 = vunpack.c.h.b16 %v509
        %v1205 = vunpack.c.l.b16 %v510
        %v1206 = vunpack.c.h.b16 %v510
        %v1207 = vunpack.c.l.b16 %v511
        %v1208 = vunpack.c.h.b16 %v511
        %v1209 = vunpack.c.l.b16 %v512
        %v1210 = vunpack.c.h.b16 %v512
        %v1211 = vunpack.c.l.b16 %v513
        %v1212 = vunpack.c.h.b16 %v513
        %v1213 = vunpack.c.l.b16 %v514
        %v1214 = vunpack.c.h.b16 %v514
        %v1215 = vunpack.c.l.b16 %v515
        %v1216 = vunpack.c.h.b16 %v515
        %v1217 = vunpack.c.l.b16 %v516
        %v1218 = vunpack.c.h.b16 %v516
        %v1219 = vunpack.c.l.b16 %v517
        %v1220 = vunpack.c.h.b16 %v517
        %v1221 = vunpack.c.l.b16 %v518
        %v1222 = vunpack.c.h.b16 %v518
        %v1223 = vunpack.c.l.b16 %v519
        %v1224 = vunpack.c.h.b16 %v519
        %v1225 = vunpack.c.l.b16 %v520
        %v1226 = vunpack.c.h.b16 %v520
        %v1227 = vunpack.c.l.b16 %v521
        %v1228 = vunpack.c.h.b16 %v521
        %v1229 = vunpack.c.l.b16 %v522
        %v1230 = vunpack.c.h.b16 %v522
        %v1231 = vunpack.c.l.b16 %v523
        %v1232 = vunpack.c.h.b16 %v523
        %v1233 = vunpack.c.l.b16 %v524
        %v1234 = vunpack.c.h.b16 %v524
        %v1235 = vunpack.c.l.b16 %v525
        %v1236 = vunpack.c.h.b16 %v525
        %v1237 = vunpack.c.l.b16 %v526
        %v1238 = vunpack.c.h.b16 %v526
        %v1239 = vunpack.c.l.b16 %v527
        %v1240 = vunpack.c.h.b16 %v527
        %v1241 = vunpack.c.l.b16 %v528
        %v1242 = vunpack.c.h.b16 %v528
        %v1243 = vunpack.c.l.b16 %v529
        %v1244 = vunpack.c.h.b16 %v529
        %v1245 = vunpack.c.l.b16 %v530
        %v1246 = vunpack.c.h.b16 %v530
        %v1247 = vunpack.c.l.b16 %v531
        %v1248 = vunpack.c.h.b16 %v531
        %v1249 = vunpack.c.l.b16 %v532
        %v1250 = vunpack.c.h.b16 %v532
        %v1251 = vunpack.c.l.b16 %v533
        %v1252 = vunpack.c.h.b16 %v533
        %v1253 = vunpack.c.l.b16 %v534
        %v1254 = vunpack.c.h.b16 %v534
        %v1255 = vunpack.c.l.b16 %v535
        %v1256 = vunpack.c.h.b16 %v535
        %v1257 = vunpack.c.l.b16 %v536
        %v1258 = vunpack.c.h.b16 %v536
        %v1259 = vunpack.c.l.b16 %v537
        %v1260 = vunpack.c.h.b16 %v537
        %v1261 = vunpack.c.l.b16 %v538
        %v1262 = vunpack.c.h.b16 %v538
        %v1263 = vunpack.c.l.b16 %v539
        %v1264 = vunpack.c.h.b16 %v539
        %v1265 = vunpack.c.l.b16 %v540
        %v1266 = vunpack.c.h.b16 %v540
        %v1267 = vunpack.c.l.b16 %v541
        %v1268 = vunpack.c.h.b16 %v541
        %v1269 = vunpack.c.l.b16 %v542
        %v1270 = vunpack.c.h.b16 %v542
        %v1271 = vunpack.c.l.b16 %v543
        %v1272 = vunpack.c.h.b16 %v543
        %v1273 = vunpack.c.l.b16 %v544
        %v1274 = vunpack.c.h.b16 %v544
        %v1275 = vunpack.c.l.b16 %v545
        %v1276 = vunpack.c.h.b16 %v545
        %v1277 = vunpack.c.l.b16 %v546
        %v1278 = vunpack.c.h.b16 %v546
        %v1279 = vunpack.c.l.b16 %v547
        %v1280 = vunpack.c.h.b16 %v547
        %v1281 = vunpack.c.l.b16 %v548
        %v1282 = vunpack.c.h.b16 %v548
        %v1283 = vunpack.c.l.b16 %v549
        %v1284 = vunpack.c.h.b16 %v549
        %v1285 = vunpack.c.l.b16 %v550
        %v1286 = vunpack.c.h.b16 %v550
        %v1287 = vunpack.c.l.b16 %v551
        %v1288 = vunpack.c.h.b16 %v551
        %v1289 = vunpack.c.l.b16 %v552
        %v1290 = vunpack.c.h.b16 %v552
        %v1291 = vunpack.c.l.b16 %v553
        %v1292 = vunpack.c.h.b16 %v553
        %v1293 = vunpack.c.l.b16 %v554
        %v1294 = vunpack.c.h.b16 %v554
        %v1295 = vunpack.c.l.b16 %v555
        %v1296 = vunpack.c.h.b16 %v555
        %v1297 = vunpack.c.l.b16 %v556
        %v1298 = vunpack.c.h.b16 %v556
        %v1299 = vunpack.c.l.b16 %v557
        %v1300 = vunpack.c.h.b16 %v557
        %v1301 = vunpack.c.l.b16 %v558
        %v1302 = vunpack.c.h.b16 %v558
        %v1303 = vunpack.c.l.b16 %v559
        %v1304 = vunpack.c.h.b16 %v559
        %v1305 = vunpack.c.l.b16 %v560
        %v1306 = vunpack.c.h.b16 %v560
        %v1307 = vunpack.c.l.b16 %v561
        %v1308 = vunpack.c.h.b16 %v561
        %v1309 = vunpack.c.l.b16 %v562
        %v1310 = vunpack.c.h.b16 %v562
        %v1311 = vunpack.c.l.b16 %v563
        %v1312 = vunpack.c.h.b16 %v563
        %v1313 = vunpack.c.l.b16 %v564
        %v1314 = vunpack.c.h.b16 %v564
        %v1315 = vunpack.c.l.b16 %v565
        %v1316 = vunpack.c.h.b16 %v565
        %v1317 = vunpack.c.l.b16 %v566
        %v1318 = vunpack.c.h.b16 %v566
        %v1319 = vunpack.c.l.b16 %v567
        %v1320 = vunpack.c.h.b16 %v567
        %v1321 = vunpack.c.l.b16 %v568
        %v1322 = vunpack.c.h.b16 %v568
        %v1323 = vunpack.c.l.b16 %v569
        %v1324 = vunpack.c.h.b16 %v569
        %v1325 = vunpack.c.l.b16 %v570
        %v1326 = vunpack.c.h.b16 %v570
        %v1327 = vunpack.c.l.b16 %v571
        %v1328 = vunpack.c.h.b16 %v571
        %v1329 = vunpack.c.l.b16 %v572
        %v1330 = vunpack.c.h.b16 %v572
        %v1331 = vunpack.c.l.b16 %v573
        %v1332 = vunpack.c.h.b16 %v573
        %v1333 = vunpack.c.l.b16 %v574
        %v1334 = vunpack.c.h.b16 %v574
        %v1335 = vunpack.c.l.b16 %v575
        %v1336 = vunpack.c.h.b16 %v575
        %v1337 = vunpack.c.l.b16 %v576
        %v1338 = vunpack.c.h.b16 %v576
        %v1339 = vunpack.c.l.b16 %v577
        %v1340 = vunpack.c.h.b16 %v577
        %v1341 = vunpack.c.l.b16 %v578
        %v1342 = vunpack.c.h.b16 %v578
        %v1343 = vunpack.c.l.b16 %v579
        %v1344 = vunpack.c.h.b16 %v579
        %v1345 = vunpack.c.l.b16 %v580
        %v1346 = vunpack.c.h.b16 %v580
        %v1347 = vunpack.c.l.b16 %v581
        %v1348 = vunpack.c.h.b16 %v581
        %v1349 = vunpack.c.l.b16 %v582
        %v1350 = vunpack.c.h.b16 %v582
        %v1351 = vunpack.c.l.b16 %v583
        %v1352 = vunpack.c.h.b16 %v583
        %v1353 = vunpack.c.l.b16 %v584
        %v1354 = vunpack.c.h.b16 %v584
        %v1355 = vunpack.c.l.b16 %v585
        %v1356 = vunpack.c.h.b16 %v585
        %v1357 = vunpack.c.l.b16 %v586
        %v1358 = vunpack.c.h.b16 %v586
        %v1359 = vunpack.c.l.b16 %v587
        %v1360 = vunpack.c.h.b16 %v587
        %v1361 = vunpack.c.l.b16 %v588
        %v1362 = vunpack.c.h.b16 %v588
        %v1363 = vunpack.c.l.b16 %v589
        %v1364 = vunpack.c.h.b16 %v589
        %v1365 = vunpack.c.l.b16 %v590
        %v1366 = vunpack.c.h.b16 %v590
        %v1367 = vunpack.c.l.b16 %v591
        %v1368 = vunpack.c.h.b16 %v591
        %v1369 = vunpack.c.l.b16 %v592
        %v1370 = vunpack.c.h.b16 %v592
        %v1371 = vunpack.c.l.b16 %v593
        %v1372 = vunpack.c.h.b16 %v593
        %v1373 = vunpack.c.l.b16 %v594
        %v1374 = vunpack.c.h.b16 %v594
        %v1375 = vunpack.c.l.b16 %v595
        %v1376 = vunpack.c.h.b16 %v595
        %v1377 = vunpack.c.l.b16 %v596
        %v1378 = vunpack.c.h.b16 %v596
        %v1379 = vunpack.c.l.b16 %v597
        %v1380 = vunpack.c.h.b16 %v597
        %v1381 = vunpack.c.l.b16 %v598
        %v1382 = vunpack.c.h.b16 %v598
        %v1383 = vunpack.c.l.b16 %v599
        %v1384 = vunpack.c.h.b16 %v599
        %v1385 = vunpack.c.l.b16 %v600
        %v1386 = vunpack.c.h.b16 %v600
        %v1387 = vunpack.c.l.b16 %v601
        %v1388 = vunpack.c.h.b16 %v601
        %v1389 = vunpack.c.l.b16 %v602
        %v1390 = vunpack.c.h.b16 %v602
        %v1391 = vunpack.c.l.b16 %v603
        %v1392 = vunpack.c.h.b16 %v603
        %v1393 = vunpack.c.l.b16 %v604
        %v1394 = vunpack.c.h.b16 %v604
        %v1395 = vunpack.c.l.b16 %v605
        %v1396 = vunpack.c.h.b16 %v605
        %v1397 = vunpack.c.l.b16 %v606
        %v1398 = vunpack.c.h.b16 %v606
        %v1399 = vunpack.c.l.b16 %v607
        %v1400 = vunpack.c.h.b16 %v607
        %v1401 = vunpack.c.l.b16 %v608
        %v1402 = vunpack.c.h.b16 %v608
        %v1403 = vunpack.c.l.b16 %v609
        %v1404 = vunpack.c.h.b16 %v609
        %v1405 = vunpack.c.l.b16 %v610
        %v1406 = vunpack.c.h.b16 %v610
        %v1407 = vunpack.c.l.b16 %v611
        %v1408 = vunpack.c.h.b16 %v611
        %v1409 = vunpack.c.l.b16 %v612
        %v1410 = vunpack.c.h.b16 %v612
        %v1411 = vunpack.c.l.b16 %v613
        %v1412 = vunpack.c.h.b16 %v613
        %v1413 = vunpack.c.l.b16 %v614
        %v1414 = vunpack.c.h.b16 %v614
        %v1415 = vunpack.c.l.b16 %v615
        %v1416 = vunpack.c.h.b16 %v615
        %v1417 = vunpack.c.l.b16 %v616
        %v1418 = vunpack.c.h.b16 %v616
        %v1419 = vunpack.c.l.b16 %v617
        %v1420 = vunpack.c.h.b16 %v617
        %v1421 = vunpack.c.l.b16 %v618
        %v1422 = vunpack.c.h.b16 %v618
        %v1423 = vunpack.c.l.b16 %v619
        %v1424 = vunpack.c.h.b16 %v619
        %v1425 = vunpack.c.l.b16 %v620
        %v1426 = vunpack.c.h.b16 %v620
        %v1427 = vunpack.c.l.b16 %v621
        %v1428 = vunpack.c.h.b16 %v621
        %v1429 = vunpack.c.l.b16 %v622
        %v1430 = vunpack.c.h.b16 %v622
        %v1431 = vunpack.c.l.b16 %v623
        %v1432 = vunpack.c.h.b16 %v623
        %v1433 = vunpack.c.l.b16 %v624
        %v1434 = vunpack.c.h.b16 %v624
        %v1435 = vpack.c.b16 %v931, %v923
        %v1436 = vpack.c.b16 %v932, %v924
        %v1437 = vpack.c.b16 %v933, %v925
        %v1438 = vpack.c.b16 %v934, %v926
        %v1439 = vpack.c.b16 %v935, %v927
        %v1440 = vpack.c.b16 %v936, %v928
        %v1441 = vpack.c.b16 %v937, %v929
        %v1442 = vpack.c.b16 %v938, %v930
        %v1443 = vpack.c.b16 %v947, %v939
        %v1444 = vpack.c.b16 %v948, %v940
        %v1445 = vpack.c.b16 %v949, %v941
        %v1446 = vpack.c.b16 %v950, %v942
        %v1447 = vpack.c.b16 %v951, %v943
        %v1448 = vpack.c.b16 %v952, %v944
        %v1449 = vpack.c.b16 %v953, %v945
        %v1450 = vpack.c.b16 %v954, %v946
        %v1451 = vpack.c.b16 %v963, %v955
        %v1452 = vpack.c.b16 %v964, %v956
        %v1453 = vpack.c.b16 %v965, %v957
        %v1454 = vpack.c.b16 %v966, %v958
        %v1455 = vpack.c.b16 %v967, %v959
        %v1456 = vpack.c.b16 %v968, %v960
        %v1457 = vpack.c.b16 %v969, %v961
        %v1458 = vpack.c.b16 %v970, %v962
        %v1459 = vpack.c.b16 %v979, %v971
        %v1460 = vpack.c.b16 %v980, %v972
        %v1461 = vpack.c.b16 %v981, %v973
        %v1462 = vpack.c.b16 %v982, %v974
        %v1463 = vpack.c.b16 %v983, %v975
        %v1464 = vpack.c.b16 %v984, %v976
        %v1465 = vpack.c.b16 %v985, %v977
        %v1466 = vpack.c.b16 %v986, %v978
        %v1467 = vpack.c.b16 %v995, %v987
        %v1468 = vpack.c.b16 %v996, %v988
        %v1469 = vpack.c.b16 %v997, %v989
        %v1470 = vpack.c.b16 %v998, %v990
        %v1471 = vpack.c.b16 %v999, %v991
        %v1472 = vpack.c.b16 %v1000, %v992
        %v1473 = vpack.c.b16 %v1001, %v993
        %v1474 = vpack.c.b16 %v1002, %v994
        %v1475 = vpack.c.b16 %v1011, %v1003
        %v1476 = vpack.c.b16 %v1012, %v1004
        %v1477 = vpack.c.b16 %v1013, %v1005
        %v1478 = vpack.c.b16 %v1014, %v1006
        %v1479 = vpack.c.b16 %v1015, %v1007
        %v1480 = vpack.c.b16 %v1016, %v1008
        %v1481 = vpack.c.b16 %v1017, %v1009
        %v1482 = vpack.c.b16 %v1018, %v1010
        %v1483 = vpack.c.b16 %v1027, %v1019
        %v1484 = vpack.c.b16 %v1028, %v1020
        %v1485 = vpack.c.b16 %v1029, %v1021
        %v1486 = vpack.c.b16 %v1030, %v1022
        %v1487 = vpack.c.b16 %v1031, %v1023
        %v1488 = vpack.c.b16 %v1032, %v1024
        %v1489 = vpack.c.b16 %v1033, %v1025
        %v1490 = vpack.c.b16 %v1034, %v1026
        %v1491 = vpack.c.b16 %v1043, %v1035
        %v1492 = vpack.c.b16 %v1044, %v1036
        %v1493 = vpack.c.b16 %v1045, %v1037
        %v1494 = vpack.c.b16 %v1046, %v1038
        %v1495 = vpack.c.b16 %v1047, %v1039
        %v1496 = vpack.c.b16 %v1048, %v1040
        %v1497 = vpack.c.b16 %v1049, %v1041
        %v1498 = vpack.c.b16 %v1050, %v1042
        %v1499 = vpack.c.b16 %v1059, %v1051
        %v1500 = vpack.c.b16 %v1060, %v1052
        %v1501 = vpack.c.b16 %v1061, %v1053
        %v1502 = vpack.c.b16 %v1062, %v1054
        %v1503 = vpack.c.b16 %v1063, %v1055
        %v1504 = vpack.c.b16 %v1064, %v1056
        %v1505 = vpack.c.b16 %v1065, %v1057
        %v1506 = vpack.c.b16 %v1066, %v1058
        %v1507 = vpack.c.b16 %v1075, %v1067
        %v1508 = vpack.c.b16 %v1076, %v1068
        %v1509 = vpack.c.b16 %v1077, %v1069
        %v1510 = vpack.c.b16 %v1078, %v1070
        %v1511 = vpack.c.b16 %v1079, %v1071
        %v1512 = vpack.c.b16 %v1080, %v1072
        %v1513 = vpack.c.b16 %v1081, %v1073
        %v1514 = vpack.c.b16 %v1082, %v1074
        %v1515 = vpack.c.b16 %v1091, %v1083
        %v1516 = vpack.c.b16 %v1092, %v1084
        %v1517 = vpack.c.b16 %v1093, %v1085
        %v1518 = vpack.c.b16 %v1094, %v1086
        %v1519 = vpack.c.b16 %v1095, %v1087
        %v1520 = vpack.c.b16 %v1096, %v1088
        %v1521 = vpack.c.b16 %v1097, %v1089
        %v1522 = vpack.c.b16 %v1098, %v1090
        %v1523 = vpack.c.b16 %v1107, %v1099
        %v1524 = vpack.c.b16 %v1108, %v1100
        %v1525 = vpack.c.b16 %v1109, %v1101
        %v1526 = vpack.c.b16 %v1110, %v1102
        %v1527 = vpack.c.b16 %v1111, %v1103
        %v1528 = vpack.c.b16 %v1112, %v1104
        %v1529 = vpack.c.b16 %v1113, %v1105
        %v1530 = vpack.c.b16 %v1114, %v1106
        %v1531 = vpack.c.b16 %v1123, %v1115
        %v1532 = vpack.c.b16 %v1124, %v1116
        %v1533 = vpack.c.b16 %v1125, %v1117
        %v1534 = vpack.c.b16 %v1126, %v1118
        %v1535 = vpack.c.b16 %v1127, %v1119
        %v1536 = vpack.c.b16 %v1128, %v1120
        %v1537 = vpack.c.b16 %v1129, %v1121
        %v1538 = vpack.c.b16 %v1130, %v1122
        %v1539 = vpack.c.b16 %v1139, %v1131
        %v1540 = vpack.c.b16 %v1140, %v1132
        %v1541 = vpack.c.b16 %v1141, %v1133
        %v1542 = vpack.c.b16 %v1142, %v1134
        %v1543 = vpack.c.b16 %v1143, %v1135
        %v1544 = vpack.c.b16 %v1144, %v1136
        %v1545 = vpack.c.b16 %v1145, %v1137
        %v1546 = vpack.c.b16 %v1146, %v1138
        %v1547 = vpack.c.b16 %v1155, %v1147
        %v1548 = vpack.c.b16 %v1156, %v1148
        %v1549 = vpack.c.b16 %v1157, %v1149
        %v1550 = vpack.c.b16 %v1158, %v1150
        %v1551 = vpack.c.b16 %v1159, %v1151
        %v1552 = vpack.c.b16 %v1160, %v1152
        %v1553 = vpack.c.b16 %v1161, %v1153
        %v1554 = vpack.c.b16 %v1162, %v1154
        %v1555 = vpack.c.b16 %v1171, %v1163
        %v1556 = vpack.c.b16 %v1172, %v1164
        %v1557 = vpack.c.b16 %v1173, %v1165
        %v1558 = vpack.c.b16 %v1174, %v1166
        %v1559 = vpack.c.b16 %v1175, %v1167
        %v1560 = vpack.c.b16 %v1176, %v1168
        %v1561 = vpack.c.b16 %v1177, %v1169
        %v1562 = vpack.c.b16 %v1178, %v1170
        %v1563 = vpack.c.b16 %v1187, %v1179
        %v1564 = vpack.c.b16 %v1188, %v1180
        %v1565 = vpack.c.b16 %v1189, %v1181
        %v1566 = vpack.c.b16 %v1190, %v1182
        %v1567 = vpack.c.b16 %v1191, %v1183
        %v1568 = vpack.c.b16 %v1192, %v1184
        %v1569 = vpack.c.b16 %v1193, %v1185
        %v1570 = vpack.c.b16 %v1194, %v1186
        %v1571 = vpack.c.b16 %v1203, %v1195
        %v1572 = vpack.c.b16 %v1204, %v1196
        %v1573 = vpack.c.b16 %v1205, %v1197
        %v1574 = vpack.c.b16 %v1206, %v1198
        %v1575 = vpack.c.b16 %v1207, %v1199
        %v1576 = vpack.c.b16 %v1208, %v1200
        %v1577 = vpack.c.b16 %v1209, %v1201
        %v1578 = vpack.c.b16 %v1210, %v1202
        %v1579 = vpack.c.b16 %v1219, %v1211
        %v1580 = vpack.c.b16 %v1220, %v1212
        %v1581 = vpack.c.b16 %v1221, %v1213
        %v1582 = vpack.c.b16 %v1222, %v1214
        %v1583 = vpack.c.b16 %v1223, %v1215
        %v1584 = vpack.c.b16 %v1224, %v1216
        %v1585 = vpack.c.b16 %v1225, %v1217
        %v1586 = vpack.c.b16 %v1226, %v1218
        %v1587 = vpack.c.b16 %v1235, %v1227
        %v1588 = vpack.c.b16 %v1236, %v1228
        %v1589 = vpack.c.b16 %v1237, %v1229
        %v1590 = vpack.c.b16 %v1238, %v1230
        %v1591 = vpack.c.b16 %v1239, %v1231
        %v1592 = vpack.c.b16 %v1240, %v1232
        %v1593 = vpack.c.b16 %v1241, %v1233
        %v1594 = vpack.c.b16 %v1242, %v1234
        %v1595 = vpack.c.b16 %v1251, %v1243
        %v1596 = vpack.c.b16 %v1252, %v1244
        %v1597 = vpack.c.b16 %v1253, %v1245
        %v1598 = vpack.c.b16 %v1254, %v1246
        %v1599 = vpack.c.b16 %v1255, %v1247
        %v1600 = vpack.c.b16 %v1256, %v1248
        %v1601 = vpack.c.b16 %v1257, %v1249
        %v1602 = vpack.c.b16 %v1258, %v1250
        %v1603 = vpack.c.b16 %v1267, %v1259
        %v1604 = vpack.c.b16 %v1268, %v1260
        %v1605 = vpack.c.b16 %v1269, %v1261
        %v1606 = vpack.c.b16 %v1270, %v1262
        %v1607 = vpack.c.b16 %v1271, %v1263
        %v1608 = vpack.c.b16 %v1272, %v1264
        %v1609 = vpack.c.b16 %v1273, %v1265
        %v1610 = vpack.c.b16 %v1274, %v1266
        %v1611 = vpack.c.b16 %v1283, %v1275
        %v1612 = vpack.c.b16 %v1284, %v1276
        %v1613 = vpack.c.b16 %v1285, %v1277
        %v1614 = vpack.c.b16 %v1286, %v1278
        %v1615 = vpack.c.b16 %v1287, %v1279
        %v1616 = vpack.c.b16 %v1288, %v1280
        %v1617 = vpack.c.b16 %v1289, %v1281
        %v1618 = vpack.c.b16 %v1290, %v1282
        %v1619 = vpack.c.b16 %v1299, %v1291
        %v1620 = vpack.c.b16 %v1300, %v1292
        %v1621 = vpack.c.b16 %v1301, %v1293
        %v1622 = vpack.c.b16 %v1302, %v1294
        %v1623 = vpack.c.b16 %v1303, %v1295
        %v1624 = vpack.c.b16 %v1304, %v1296
        %v1625 = vpack.c.b16 %v1305, %v1297
        %v1626 = vpack.c.b16 %v1306, %v1298
        %v1627 = vpack.c.b16 %v1315, %v1307
        %v1628 = vpack.c.b16 %v1316, %v1308
        %v1629 = vpack.c.b16 %v1317, %v1309
        %v1630 = vpack.c.b16 %v1318, %v1310
        %v1631 = vpack.c.b16 %v1319, %v1311
        %v1632 = vpack.c.b16 %v1320, %v1312
        %v1633 = vpack.c.b16 %v1321, %v1313
        %v1634 = vpack.c.b16 %v1322, %v1314
        %v1635 = vpack.c.b16 %v1331, %v1323
        %v1636 = vpack.c.b16 %v1332, %v1324
        %v1637 = vpack.c.b16 %v1333, %v1325
        %v1638 = vpack.c.b16 %v1334, %v1326
        %v1639 = vpack.c.b16 %v1335, %v1327
        %v1640 = vpack.c.b16 %v1336, %v1328
        %v1641 = vpack.c.b16 %v1337, %v1329
        %v1642 = vpack.c.b16 %v1338, %v1330
        %v1643 = vpack.c.b16 %v1347, %v1339
        %v1644 = vpack.c.b16 %v1348, %v1340
        %v1645 = vpack.c.b16 %v1349, %v1341
        %v1646 = vpack.c.b16 %v1350, %v1342
        %v1647 = vpack.c.b16 %v1351, %v1343
        %v1648 = vpack.c.b16 %v1352, %v1344
        %v1649 = vpack.c.b16 %v1353, %v1345
        %v1650 = vpack.c.b16 %v1354, %v1346
        %v1651 = vpack.c.b16 %v1363, %v1355
        %v1652 = vpack.c.b16 %v1364, %v1356
        %v1653 = vpack.c.b16 %v1365, %v1357
        %v1654 = vpack.c.b16 %v1366, %v1358
        %v1655 = vpack.c.b16 %v1367, %v1359
        %v1656 = vpack.c.b16 %v1368, %v1360
        %v1657 = vpack.c.b16 %v1369, %v1361
        %v1658 = vpack.c.b16 %v1370, %v1362
        %v1659 = vpack.c.b16 %v1379, %v1371
        %v1660 = vpack.c.b16 %v1380, %v1372
        %v1661 = vpack.c.b16 %v1381, %v1373
        %v1662 = vpack.c.b16 %v1382, %v1374
        %v1663 = vpack.c.b16 %v1383, %v1375
        %v1664 = vpack.c.b16 %v1384, %v1376
        %v1665 = vpack.c.b16 %v1385, %v1377
        %v1666 = vpack.c.b16 %v1386, %v1378
        %v1667 = vpack.c.b16 %v1395, %v1387
        %v1668 = vpack.c.b16 %v1396, %v1388
        %v1669 = vpack.c.b16 %v1397, %v1389
        %v1670 = vpack.c.b16 %v1398, %v1390
        %v1671 = vpack.c.b16 %v1399, %v1391
        %v1672 = vpack.c.b16 %v1400, %v1392
        %v1673 = vpack.c.b16 %v1401, %v1393
        %v1674 = vpack.c.b16 %v1402, %v1394
        %v1675 = vpack.c.b16 %v1411, %v1403
        %v1676 = vpack.c.b16 %v1412, %v1404
        %v1677 = vpack.c.b16 %v1413, %v1405
        %v1678 = vpack.c.b16 %v1414, %v1406
        %v1679 = vpack.c.b16 %v1415, %v1407
        %v1680 = vpack.c.b16 %v1416, %v1408
        %v1681 = vpack.c.b16 %v1417, %v1409
        %v1682 = vpack.c.b16 %v1418, %v1410
        %v1683 = vpack.c.b16 %v1427, %v1419
        %v1684 = vpack.c.b16 %v1428, %v1420
        %v1685 = vpack.c.b16 %v1429, %v1421
        %v1686 = vpack.c.b16 %v1430, %v1422
        %v1687 = vpack.c.b16 %v1431, %v1423
        %v1688 = vpack.c.b16 %v1432, %v1424
        %v1689 = vpack.c.b16 %v1433, %v1425
        %v1690 = vpack.c.b16 %v1434, %v1426
        %1947 = vmatprep.subr.bf16.mxu0 %v1492
        %1948 = vmatpush1.bf16.msra.mxu0 %v1491
        %1949 = vmatprep.subr.bf16.mxu0 %v1484
        %1950 = vmatpush1.bf16.msra.mxu0 %v1483
        %1951 = vmatprep.subr.bf16.mxu0 %v1476
        %1952 = vmatpush1.bf16.msra.mxu0 %v1475
        %1953 = vmatprep.subr.bf16.mxu0 %v1468
        %1954 = vmatpush1.bf16.msra.mxu0 %v1467
        %1955 = vmatprep.subr.bf16.mxu0 %v1460
        %1956 = vmatpush1.bf16.msra.mxu0 %v1459
        %1957 = vmatprep.subr.bf16.mxu0 %v1452
        %1958 = vmatpush1.bf16.msra.mxu0 %v1451
        %1959 = vmatprep.subr.bf16.mxu0 %v1444
        %1960 = vmatpush1.bf16.msra.mxu0 %v1443
        %1961 = vmatprep.subr.bf16.mxu0 %v1436
        %1962 = vmatpush1.bf16.msra.mxu0 %v1435
        %1963 = vmatprep.subr.bf16.mxu0 %v1556
        %1964 = vmatpush2.bf16.msra.mxu0 %v1555
        %1965 = vmatprep.subr.bf16.mxu0 %v1548
        %1966 = vmatpush2.bf16.msra.mxu0 %v1547
        %1967 = vmatprep.subr.bf16.mxu0 %v1540
        %1968 = vmatpush2.bf16.msra.mxu0 %v1539
        %1969 = vmatprep.subr.bf16.mxu0 %v1532
        %1970 = vmatpush2.bf16.msra.mxu0 %v1531
        %1971 = vmatprep.subr.bf16.mxu0 %v1524
        %1972 = vmatpush2.bf16.msra.mxu0 %v1523
        %1973 = vmatprep.subr.bf16.mxu0 %v1516
        %1974 = vmatpush2.bf16.msra.mxu0 %v1515
        %1975 = vmatprep.subr.bf16.mxu0 %v1508
        %1976 = vmatpush2.bf16.msra.mxu0 %v1507
        %1977 = vmatprep.subr.bf16.mxu0 %v1500
        %1978 = vmatpush2.bf16.msra.mxu0 %v1499
        %1979 = vmatprep.mubr.bf16.mxu0 %v366
        %1980 = vmatmul.mubr.bf16.gmra.mxu0 %v365
        %v1981 = vpop.f32.mrf.mxu0
        %v1982 = vadd.f32 %v630, %v1981
        %v1983 = vpop.f32.mrf.mxu0
        %v1984 = vadd.f32 %v634, %v1983
        %v1985 = vpop.f32.mrf.mxu0
        %v1986 = vadd.f32 %v630, %v1985
        %v1987 = vpop.f32.mrf.mxu0
        %v1988 = vadd.f32 %v634, %v1987
        %1989 = vdwg.mxu0
        %1990 = vmatprep.subr.bf16.mxu0 %v1620
        %1991 = vmatpush1.bf16.msra.mxu0 %v1619
        %1992 = vmatprep.subr.bf16.mxu0 %v1612
        %1993 = vmatpush1.bf16.msra.mxu0 %v1611
        %1994 = vmatprep.subr.bf16.mxu0 %v1604
        %1995 = vmatpush1.bf16.msra.mxu0 %v1603
        %1996 = vmatprep.subr.bf16.mxu0 %v1596
        %1997 = vmatpush1.bf16.msra.mxu0 %v1595
        %1998 = vmatprep.subr.bf16.mxu0 %v1588
        %1999 = vmatpush1.bf16.msra.mxu0 %v1587
        %2000 = vmatprep.subr.bf16.mxu0 %v1580
        %2001 = vmatpush1.bf16.msra.mxu0 %v1579
        %2002 = vmatprep.subr.bf16.mxu0 %v1572
        %2003 = vmatpush1.bf16.msra.mxu0 %v1571
        %2004 = vmatprep.subr.bf16.mxu0 %v1564
        %2005 = vmatpush1.bf16.msra.mxu0 %v1563
        %2006 = vmatprep.subr.bf16.mxu0 %v1684
        %2007 = vmatpush2.bf16.msra.mxu0 %v1683
        %2008 = vmatprep.subr.bf16.mxu0 %v1676
        %2009 = vmatpush2.bf16.msra.mxu0 %v1675
        %2010 = vmatprep.subr.bf16.mxu0 %v1668
        %2011 = vmatpush2.bf16.msra.mxu0 %v1667
        %2012 = vmatprep.subr.bf16.mxu0 %v1660
        %2013 = vmatpush2.bf16.msra.mxu0 %v1659
        %2014 = vmatprep.subr.bf16.mxu0 %v1652
        %2015 = vmatpush2.bf16.msra.mxu0 %v1651
        %2016 = vmatprep.subr.bf16.mxu0 %v1644
        %2017 = vmatpush2.bf16.msra.mxu0 %v1643
        %2018 = vmatprep.subr.bf16.mxu0 %v1636
        %2019 = vmatpush2.bf16.msra.mxu0 %v1635
        %2020 = vmatprep.subr.bf16.mxu0 %v1628
        %2021 = vmatpush2.bf16.msra.mxu0 %v1627
        %2022 = vmatprep.mubr.bf16.mxu0 %v368
        %2023 = vmatmul.mubr.bf16.gmra.mxu0 %v367
        %v2024 = vpop.f32.mrf.mxu0
        %v2025 = vadd.f32 %v1982, %v2024
        %v2026 = vpop.f32.mrf.mxu0
        %v2027 = vadd.f32 %v1984, %v2026
        %v2028 = vpop.f32.mrf.mxu0
        %v2029 = vadd.f32 %v1986, %v2028
        %v2030 = vpop.f32.mrf.mxu0
        %v2031 = vadd.f32 %v1988, %v2030
        %2032 = vdwg.mxu0
        %2033 = vmatprep.subr.bf16.mxu0 %v1494
        %2034 = vmatpush1.bf16.msra.mxu0 %v1493
        %2035 = vmatprep.subr.bf16.mxu0 %v1486
        %2036 = vmatpush1.bf16.msra.mxu0 %v1485
        %2037 = vmatprep.subr.bf16.mxu0 %v1478
        %2038 = vmatpush1.bf16.msra.mxu0 %v1477
        %2039 = vmatprep.subr.bf16.mxu0 %v1470
        %2040 = vmatpush1.bf16.msra.mxu0 %v1469
        %2041 = vmatprep.subr.bf16.mxu0 %v1462
        %2042 = vmatpush1.bf16.msra.mxu0 %v1461
        %2043 = vmatprep.subr.bf16.mxu0 %v1454
        %2044 = vmatpush1.bf16.msra.mxu0 %v1453
        %2045 = vmatprep.subr.bf16.mxu0 %v1446
        %2046 = vmatpush1.bf16.msra.mxu0 %v1445
        %2047 = vmatprep.subr.bf16.mxu0 %v1438
        %2048 = vmatpush1.bf16.msra.mxu0 %v1437
        %2049 = vmatprep.subr.bf16.mxu0 %v1558
        %2050 = vmatpush2.bf16.msra.mxu0 %v1557
        %2051 = vmatprep.subr.bf16.mxu0 %v1550
        %2052 = vmatpush2.bf16.msra.mxu0 %v1549
        %2053 = vmatprep.subr.bf16.mxu0 %v1542
        %2054 = vmatpush2.bf16.msra.mxu0 %v1541
        %2055 = vmatprep.subr.bf16.mxu0 %v1534
        %2056 = vmatpush2.bf16.msra.mxu0 %v1533
        %2057 = vmatprep.subr.bf16.mxu0 %v1526
        %2058 = vmatpush2.bf16.msra.mxu0 %v1525
        %2059 = vmatprep.subr.bf16.mxu0 %v1518
        %2060 = vmatpush2.bf16.msra.mxu0 %v1517
        %2061 = vmatprep.subr.bf16.mxu0 %v1510
        %2062 = vmatpush2.bf16.msra.mxu0 %v1509
        %2063 = vmatprep.subr.bf16.mxu0 %v1502
        %2064 = vmatpush2.bf16.msra.mxu0 %v1501
        %2065 = vmatprep.mubr.bf16.mxu0 %v366
        %2066 = vmatmul.mubr.bf16.gmra.mxu0 %v365
        %v2067 = vpop.f32.mrf.mxu0
        %v2068 = vadd.f32 %v638, %v2067
        %v2069 = vpop.f32.mrf.mxu0
        %v2070 = vadd.f32 %v642, %v2069
        %v2071 = vpop.f32.mrf.mxu0
        %v2072 = vadd.f32 %v638, %v2071
        %v2073 = vpop.f32.mrf.mxu0
        %v2074 = vadd.f32 %v642, %v2073
        %2075 = vdwg.mxu0
        %2076 = vmatprep.subr.bf16.mxu0 %v1622
        %2077 = vmatpush1.bf16.msra.mxu0 %v1621
        %2078 = vmatprep.subr.bf16.mxu0 %v1614
        %2079 = vmatpush1.bf16.msra.mxu0 %v1613
        %2080 = vmatprep.subr.bf16.mxu0 %v1606
        %2081 = vmatpush1.bf16.msra.mxu0 %v1605
        %2082 = vmatprep.subr.bf16.mxu0 %v1598
        %2083 = vmatpush1.bf16.msra.mxu0 %v1597
        %2084 = vmatprep.subr.bf16.mxu0 %v1590
        %2085 = vmatpush1.bf16.msra.mxu0 %v1589
        %2086 = vmatprep.subr.bf16.mxu0 %v1582
        %2087 = vmatpush1.bf16.msra.mxu0 %v1581
        %2088 = vmatprep.subr.bf16.mxu0 %v1574
        %2089 = vmatpush1.bf16.msra.mxu0 %v1573
        %2090 = vmatprep.subr.bf16.mxu0 %v1566
        %2091 = vmatpush1.bf16.msra.mxu0 %v1565
        %2092 = vmatprep.subr.bf16.mxu0 %v1686
        %2093 = vmatpush2.bf16.msra.mxu0 %v1685
        %2094 = vmatprep.subr.bf16.mxu0 %v1678
        %2095 = vmatpush2.bf16.msra.mxu0 %v1677
        %2096 = vmatprep.subr.bf16.mxu0 %v1670
        %2097 = vmatpush2.bf16.msra.mxu0 %v1669
        %2098 = vmatprep.subr.bf16.mxu0 %v1662
        %2099 = vmatpush2.bf16.msra.mxu0 %v1661
        %2100 = vmatprep.subr.bf16.mxu0 %v1654
        %2101 = vmatpush2.bf16.msra.mxu0 %v1653
        %2102 = vmatprep.subr.bf16.mxu0 %v1646
        %2103 = vmatpush2.bf16.msra.mxu0 %v1645
        %2104 = vmatprep.subr.bf16.mxu0 %v1638
        %2105 = vmatpush2.bf16.msra.mxu0 %v1637
        %2106 = vmatprep.subr.bf16.mxu0 %v1630
        %2107 = vmatpush2.bf16.msra.mxu0 %v1629
        %2108 = vmatprep.mubr.bf16.mxu0 %v368
        %2109 = vmatmul.mubr.bf16.gmra.mxu0 %v367
        %v2110 = vpop.f32.mrf.mxu0
        %v2111 = vadd.f32 %v2068, %v2110
        %v2112 = vpop.f32.mrf.mxu0
        %v2113 = vadd.f32 %v2070, %v2112
        %v2114 = vpop.f32.mrf.mxu0
        %v2115 = vadd.f32 %v2072, %v2114
        %v2116 = vpop.f32.mrf.mxu0
        %v2117 = vadd.f32 %v2074, %v2116
        %2118 = vdwg.mxu0
        %2119 = vmatprep.subr.bf16.mxu0 %v1496
        %2120 = vmatpush1.bf16.msra.mxu0 %v1495
        %2121 = vmatprep.subr.bf16.mxu0 %v1488
        %2122 = vmatpush1.bf16.msra.mxu0 %v1487
        %2123 = vmatprep.subr.bf16.mxu0 %v1480
        %2124 = vmatpush1.bf16.msra.mxu0 %v1479
        %2125 = vmatprep.subr.bf16.mxu0 %v1472
        %2126 = vmatpush1.bf16.msra.mxu0 %v1471
        %2127 = vmatprep.subr.bf16.mxu0 %v1464
        %2128 = vmatpush1.bf16.msra.mxu0 %v1463
        %2129 = vmatprep.subr.bf16.mxu0 %v1456
        %2130 = vmatpush1.bf16.msra.mxu0 %v1455
        %2131 = vmatprep.subr.bf16.mxu0 %v1448
        %2132 = vmatpush1.bf16.msra.mxu0 %v1447
        %2133 = vmatprep.subr.bf16.mxu0 %v1440
        %2134 = vmatpush1.bf16.msra.mxu0 %v1439
        %2135 = vmatprep.subr.bf16.mxu0 %v1560
        %2136 = vmatpush2.bf16.msra.mxu0 %v1559
        %2137 = vmatprep.subr.bf16.mxu0 %v1552
        %2138 = vmatpush2.bf16.msra.mxu0 %v1551
        %2139 = vmatprep.subr.bf16.mxu0 %v1544
        %2140 = vmatpush2.bf16.msra.mxu0 %v1543
        %2141 = vmatprep.subr.bf16.mxu0 %v1536
        %2142 = vmatpush2.bf16.msra.mxu0 %v1535
        %2143 = vmatprep.subr.bf16.mxu0 %v1528
        %2144 = vmatpush2.bf16.msra.mxu0 %v1527
        %2145 = vmatprep.subr.bf16.mxu0 %v1520
        %2146 = vmatpush2.bf16.msra.mxu0 %v1519
        %2147 = vmatprep.subr.bf16.mxu0 %v1512
        %2148 = vmatpush2.bf16.msra.mxu0 %v1511
        %2149 = vmatprep.subr.bf16.mxu0 %v1504
        %2150 = vmatpush2.bf16.msra.mxu0 %v1503
        %2151 = vmatprep.mubr.bf16.mxu0 %v366
        %2152 = vmatmul.mubr.bf16.gmra.mxu0 %v365
        %v2153 = vpop.f32.mrf.mxu0
        %v2154 = vadd.f32 %v646, %v2153
        %v2155 = vpop.f32.mrf.mxu0
        %v2156 = vadd.f32 %v650, %v2155
        %v2157 = vpop.f32.mrf.mxu0
        %v2158 = vadd.f32 %v646, %v2157
        %v2159 = vpop.f32.mrf.mxu0
        %v2160 = vadd.f32 %v650, %v2159
        %2161 = vdwg.mxu0
        %2162 = vmatprep.subr.bf16.mxu0 %v1624
        %2163 = vmatpush1.bf16.msra.mxu0 %v1623
        %2164 = vmatprep.subr.bf16.mxu0 %v1616
        %2165 = vmatpush1.bf16.msra.mxu0 %v1615
        %2166 = vmatprep.subr.bf16.mxu0 %v1608
        %2167 = vmatpush1.bf16.msra.mxu0 %v1607
        %2168 = vmatprep.subr.bf16.mxu0 %v1600
        %2169 = vmatpush1.bf16.msra.mxu0 %v1599
        %2170 = vmatprep.subr.bf16.mxu0 %v1592
        %2171 = vmatpush1.bf16.msra.mxu0 %v1591
        %2172 = vmatprep.subr.bf16.mxu0 %v1584
        %2173 = vmatpush1.bf16.msra.mxu0 %v1583
        %2174 = vmatprep.subr.bf16.mxu0 %v1576
        %2175 = vmatpush1.bf16.msra.mxu0 %v1575
        %2176 = vmatprep.subr.bf16.mxu0 %v1568
        %2177 = vmatpush1.bf16.msra.mxu0 %v1567
        %2178 = vmatprep.subr.bf16.mxu0 %v1688
        %2179 = vmatpush2.bf16.msra.mxu0 %v1687
        %2180 = vmatprep.subr.bf16.mxu0 %v1680
        %2181 = vmatpush2.bf16.msra.mxu0 %v1679
        %2182 = vmatprep.subr.bf16.mxu0 %v1672
        %2183 = vmatpush2.bf16.msra.mxu0 %v1671
        %2184 = vmatprep.subr.bf16.mxu0 %v1664
        %2185 = vmatpush2.bf16.msra.mxu0 %v1663
        %2186 = vmatprep.subr.bf16.mxu0 %v1656
        %2187 = vmatpush2.bf16.msra.mxu0 %v1655
        %2188 = vmatprep.subr.bf16.mxu0 %v1648
        %2189 = vmatpush2.bf16.msra.mxu0 %v1647
        %2190 = vmatprep.subr.bf16.mxu0 %v1640
        %2191 = vmatpush2.bf16.msra.mxu0 %v1639
        %2192 = vmatprep.subr.bf16.mxu0 %v1632
        %2193 = vmatpush2.bf16.msra.mxu0 %v1631
        %2194 = vmatprep.mubr.bf16.mxu0 %v368
        %2195 = vmatmul.mubr.bf16.gmra.mxu0 %v367
        %v2196 = vpop.f32.mrf.mxu0
        %v2197 = vadd.f32 %v2154, %v2196
        %v2198 = vpop.f32.mrf.mxu0
        %v2199 = vadd.f32 %v2156, %v2198
        %v2200 = vpop.f32.mrf.mxu0
        %v2201 = vadd.f32 %v2158, %v2200
        %v2202 = vpop.f32.mrf.mxu0
        %v2203 = vadd.f32 %v2160, %v2202
        %2204 = vdwg.mxu0
        %2205 = vmatprep.subr.bf16.mxu0 %v1498
        %2206 = vmatpush1.bf16.msra.mxu0 %v1497
        %2207 = vmatprep.subr.bf16.mxu0 %v1490
        %2208 = vmatpush1.bf16.msra.mxu0 %v1489
        %2209 = vmatprep.subr.bf16.mxu0 %v1482
        %2210 = vmatpush1.bf16.msra.mxu0 %v1481
        %2211 = vmatprep.subr.bf16.mxu0 %v1474
        %2212 = vmatpush1.bf16.msra.mxu0 %v1473
        %2213 = vmatprep.subr.bf16.mxu0 %v1466
        %2214 = vmatpush1.bf16.msra.mxu0 %v1465
        %2215 = vmatprep.subr.bf16.mxu0 %v1458
        %2216 = vmatpush1.bf16.msra.mxu0 %v1457
        %2217 = vmatprep.subr.bf16.mxu0 %v1450
        %2218 = vmatpush1.bf16.msra.mxu0 %v1449
        %2219 = vmatprep.subr.bf16.mxu0 %v1442
        %2220 = vmatpush1.bf16.msra.mxu0 %v1441
        %2221 = vmatprep.subr.bf16.mxu0 %v1562
        %2222 = vmatpush2.bf16.msra.mxu0 %v1561
        %2223 = vmatprep.subr.bf16.mxu0 %v1554
        %2224 = vmatpush2.bf16.msra.mxu0 %v1553
        %2225 = vmatprep.subr.bf16.mxu0 %v1546
        %2226 = vmatpush2.bf16.msra.mxu0 %v1545
        %2227 = vmatprep.subr.bf16.mxu0 %v1538
        %2228 = vmatpush2.bf16.msra.mxu0 %v1537
        %2229 = vmatprep.subr.bf16.mxu0 %v1530
        %2230 = vmatpush2.bf16.msra.mxu0 %v1529
        %2231 = vmatprep.subr.bf16.mxu0 %v1522
        %2232 = vmatpush2.bf16.msra.mxu0 %v1521
        %2233 = vmatprep.subr.bf16.mxu0 %v1514
        %2234 = vmatpush2.bf16.msra.mxu0 %v1513
        %2235 = vmatprep.subr.bf16.mxu0 %v1506
        %2236 = vmatpush2.bf16.msra.mxu0 %v1505
        %2237 = vmatprep.mubr.bf16.mxu0 %v366
        %2238 = vmatmul.mubr.bf16.gmra.mxu0 %v365
        %v2239 = vpop.f32.mrf.mxu0
        %v2240 = vadd.f32 %v654, %v2239
        %v2241 = vpop.f32.mrf.mxu0
        %v2242 = vadd.f32 %v658, %v2241
        %v2243 = vpop.f32.mrf.mxu0
        %v2244 = vadd.f32 %v654, %v2243
        %v2245 = vpop.f32.mrf.mxu0
        %v2246 = vadd.f32 %v658, %v2245
        %2247 = vdwg.mxu0
        %2248 = vmatprep.subr.bf16.mxu0 %v1626
        %2249 = vmatpush1.bf16.msra.mxu0 %v1625
        %2250 = vmatprep.subr.bf16.mxu0 %v1618
        %2251 = vmatpush1.bf16.msra.mxu0 %v1617
        %2252 = vmatprep.subr.bf16.mxu0 %v1610
        %2253 = vmatpush1.bf16.msra.mxu0 %v1609
        %2254 = vmatprep.subr.bf16.mxu0 %v1602
        %2255 = vmatpush1.bf16.msra.mxu0 %v1601
        %2256 = vmatprep.subr.bf16.mxu0 %v1594
        %2257 = vmatpush1.bf16.msra.mxu0 %v1593
        %2258 = vmatprep.subr.bf16.mxu0 %v1586
        %2259 = vmatpush1.bf16.msra.mxu0 %v1585
        %2260 = vmatprep.subr.bf16.mxu0 %v1578
        %2261 = vmatpush1.bf16.msra.mxu0 %v1577
        %2262 = vmatprep.subr.bf16.mxu0 %v1570
        %2263 = vmatpush1.bf16.msra.mxu0 %v1569
        %2264 = vmatprep.subr.bf16.mxu0 %v1690
        %2265 = vmatpush2.bf16.msra.mxu0 %v1689
        %2266 = vmatprep.subr.bf16.mxu0 %v1682
        %2267 = vmatpush2.bf16.msra.mxu0 %v1681
        %2268 = vmatprep.subr.bf16.mxu0 %v1674
        %2269 = vmatpush2.bf16.msra.mxu0 %v1673
        %2270 = vmatprep.subr.bf16.mxu0 %v1666
        %2271 = vmatpush2.bf16.msra.mxu0 %v1665
        %2272 = vmatprep.subr.bf16.mxu0 %v1658
        %2273 = vmatpush2.bf16.msra.mxu0 %v1657
        %2274 = vmatprep.subr.bf16.mxu0 %v1650
        %2275 = vmatpush2.bf16.msra.mxu0 %v1649
        %2276 = vmatprep.subr.bf16.mxu0 %v1642
        %2277 = vmatpush2.bf16.msra.mxu0 %v1641
        %2278 = vmatprep.subr.bf16.mxu0 %v1634
        %2279 = vmatpush2.bf16.msra.mxu0 %v1633
        %2280 = vmatprep.mubr.bf16.mxu0 %v368
        %2281 = vmatmul.mubr.bf16.gmra.mxu0 %v367
        %v2282 = vpop.f32.mrf.mxu0
        %v2283 = vadd.f32 %v2240, %v2282
        %v2284 = vpop.f32.mrf.mxu0
        %v2285 = vadd.f32 %v2242, %v2284
        %v2286 = vpop.f32.mrf.mxu0
        %v2287 = vadd.f32 %v2244, %v2286
        %v2288 = vpop.f32.mrf.mxu0
        %v2289 = vadd.f32 %v2246, %v2288
        %2290 = vdwg.mxu0
        %v2291 = vmax.f32 %v2025, 0.0
        %v2292 = vmax.f32 %v2027, 0.0
        %v2293 = vmax.f32 %v2111, 0.0
        %v2294 = vmax.f32 %v2113, 0.0
        %v2295 = vmax.f32 %v2197, 0.0
        %v2296 = vmax.f32 %v2199, 0.0
        %v2297 = vmax.f32 %v2283, 0.0
        %v2298 = vmax.f32 %v2285, 0.0
        %v2299 = vmax.f32 %v2029, 0.0
        %v2300 = vmax.f32 %v2031, 0.0
        %v2301 = vmax.f32 %v2115, 0.0
        %v2302 = vmax.f32 %v2117, 0.0
        %v2303 = vmax.f32 %v2201, 0.0
        %v2304 = vmax.f32 %v2203, 0.0
        %v2305 = vmax.f32 %v2287, 0.0
        %v2306 = vmax.f32 %v2289, 0.0
        %v2307 = vpack.c.bf16 %v2299, %v2291
        %v2308 = vpack.c.bf16 %v2300, %v2292
        %v2309 = vpack.c.bf16 %v2301, %v2293
        %v2310 = vpack.c.bf16 %v2302, %v2294
        %v2311 = vpack.c.bf16 %v2303, %v2295
        %v2312 = vpack.c.bf16 %v2304, %v2296
        %v2313 = vpack.c.bf16 %v2305, %v2297
        %v2314 = vpack.c.bf16 %v2306, %v2298
        %v2315 = vld [vmem:[#allocation8] sm:$0xff]
        %v2316 = vld [vmem:[#allocation8 + $0x8] sm:$0xff]
        %v2317 = vld [vmem:[#allocation8 + $0x10] sm:$0xff]
        %v2318 = vld [vmem:[#allocation8 + $0x18] sm:$0xff]
        %v2319 = vld [vmem:[#allocation8 + $0x20] sm:$0xff]
        %v2320 = vld [vmem:[#allocation8 + $0x28] sm:$0xff]
        %v2321 = vld [vmem:[#allocation8 + $0x30] sm:$0xff]
        %v2322 = vld [vmem:[#allocation8 + $0x38] sm:$0xff]
        %v2323 = vld [vmem:[#allocation8 + $0x40] sm:$0xff]
        %v2324 = vld [vmem:[#allocation8 + $0x48] sm:$0xff]
        %v2325 = vld [vmem:[#allocation8 + $0x50] sm:$0xff]
        %v2326 = vld [vmem:[#allocation8 + $0x58] sm:$0xff]
        %v2327 = vld [vmem:[#allocation8 + $0x60] sm:$0xff]
        %v2328 = vld [vmem:[#allocation8 + $0x68] sm:$0xff]
        %v2329 = vld [vmem:[#allocation8 + $0x70] sm:$0xff]
        %v2330 = vld [vmem:[#allocation8 + $0x78] sm:$0xff]
        %v2331 = vld [vmem:[#allocation8 + $0x80] sm:$0xff]
        %v2332 = vld [vmem:[#allocation8 + $0x88] sm:$0xff]
        %v2333 = vld [vmem:[#allocation8 + $0x90] sm:$0xff]
        %v2334 = vld [vmem:[#allocation8 + $0x98] sm:$0xff]
        %v2335 = vld [vmem:[#allocation8 + $0xa0] sm:$0xff]
        %v2336 = vld [vmem:[#allocation8 + $0xa8] sm:$0xff]
        %v2337 = vld [vmem:[#allocation8 + $0xb0] sm:$0xff]
        %v2338 = vld [vmem:[#allocation8 + $0xb8] sm:$0xff]
        %v2339 = vld [vmem:[#allocation8 + $0xc0] sm:$0xff]
        %v2340 = vld [vmem:[#allocation8 + $0xc8] sm:$0xff]
        %v2341 = vld [vmem:[#allocation8 + $0xd0] sm:$0xff]
        %v2342 = vld [vmem:[#allocation8 + $0xd8] sm:$0xff]
        %v2343 = vld [vmem:[#allocation8 + $0xe0] sm:$0xff]
        %v2344 = vld [vmem:[#allocation8 + $0xe8] sm:$0xff]
        %v2345 = vld [vmem:[#allocation8 + $0xf0] sm:$0xff]
        %v2346 = vld [vmem:[#allocation8 + $0xf8] sm:$0xff]
        %v2347 = vld [vmem:[#allocation8 + $0x100] sm:$0xff]
        %v2348 = vld [vmem:[#allocation8 + $0x108] sm:$0xff]
        %v2349 = vld [vmem:[#allocation8 + $0x110] sm:$0xff]
        %v2350 = vld [vmem:[#allocation8 + $0x118] sm:$0xff]
        %v2351 = vld [vmem:[#allocation8 + $0x120] sm:$0xff]
        %v2352 = vld [vmem:[#allocation8 + $0x128] sm:$0xff]
        %v2353 = vld [vmem:[#allocation8 + $0x130] sm:$0xff]
        %v2354 = vld [vmem:[#allocation8 + $0x138] sm:$0xff]
        %v2355 = vld [vmem:[#allocation8 + $0x140] sm:$0xff]
        %v2356 = vld [vmem:[#allocation8 + $0x148] sm:$0xff]
        %v2357 = vld [vmem:[#allocation8 + $0x150] sm:$0xff]
        %v2358 = vld [vmem:[#allocation8 + $0x158] sm:$0xff]
        %v2359 = vld [vmem:[#allocation8 + $0x160] sm:$0xff]
        %v2360 = vld [vmem:[#allocation8 + $0x168] sm:$0xff]
        %v2361 = vld [vmem:[#allocation8 + $0x170] sm:$0xff]
        %v2362 = vld [vmem:[#allocation8 + $0x178] sm:$0xff]
        %v2363 = vld [vmem:[#allocation8 + $0x180] sm:$0xff]
        %v2364 = vld [vmem:[#allocation8 + $0x188] sm:$0xff]
        %v2365 = vld [vmem:[#allocation8 + $0x190] sm:$0xff]
        %v2366 = vld [vmem:[#allocation8 + $0x198] sm:$0xff]
        %v2367 = vld [vmem:[#allocation8 + $0x1a0] sm:$0xff]
        %v2368 = vld [vmem:[#allocation8 + $0x1a8] sm:$0xff]
        %v2369 = vld [vmem:[#allocation8 + $0x1b0] sm:$0xff]
        %v2370 = vld [vmem:[#allocation8 + $0x1b8] sm:$0xff]
        %v2371 = vld [vmem:[#allocation8 + $0x1c0] sm:$0xff]
        %v2372 = vld [vmem:[#allocation8 + $0x1c8] sm:$0xff]
        %v2373 = vld [vmem:[#allocation8 + $0x1d0] sm:$0xff]
        %v2374 = vld [vmem:[#allocation8 + $0x1d8] sm:$0xff]
        %v2375 = vld [vmem:[#allocation8 + $0x1e0] sm:$0xff]
        %v2376 = vld [vmem:[#allocation8 + $0x1e8] sm:$0xff]
        %v2377 = vld [vmem:[#allocation8 + $0x1f0] sm:$0xff]
        %v2378 = vld [vmem:[#allocation8 + $0x1f8] sm:$0xff]
        %v2379 = vld [vmem:[#allocation8 + $0x200] sm:$0xff]
        %v2380 = vld [vmem:[#allocation8 + $0x208] sm:$0xff]
        %v2381 = vld [vmem:[#allocation8 + $0x210] sm:$0xff]
        %v2382 = vld [vmem:[#allocation8 + $0x218] sm:$0xff]
        %v2383 = vld [vmem:[#allocation8 + $0x220] sm:$0xff]
        %v2384 = vld [vmem:[#allocation8 + $0x228] sm:$0xff]
        %v2385 = vld [vmem:[#allocation8 + $0x230] sm:$0xff]
        %v2386 = vld [vmem:[#allocation8 + $0x238] sm:$0xff]
        %v2387 = vld [vmem:[#allocation8 + $0x240] sm:$0xff]
        %v2388 = vld [vmem:[#allocation8 + $0x248] sm:$0xff]
        %v2389 = vld [vmem:[#allocation8 + $0x250] sm:$0xff]
        %v2390 = vld [vmem:[#allocation8 + $0x258] sm:$0xff]
        %v2391 = vld [vmem:[#allocation8 + $0x260] sm:$0xff]
        %v2392 = vld [vmem:[#allocation8 + $0x268] sm:$0xff]
        %v2393 = vld [vmem:[#allocation8 + $0x270] sm:$0xff]
        %v2394 = vld [vmem:[#allocation8 + $0x278] sm:$0xff]
        %v2395 = vld [vmem:[#allocation8 + $0x280] sm:$0xff]
        %v2396 = vld [vmem:[#allocation8 + $0x288] sm:$0xff]
        %v2397 = vld [vmem:[#allocation8 + $0x290] sm:$0xff]
        %v2398 = vld [vmem:[#allocation8 + $0x298] sm:$0xff]
        %v2399 = vld [vmem:[#allocation8 + $0x2a0] sm:$0xff]
        %v2400 = vld [vmem:[#allocation8 + $0x2a8] sm:$0xff]
        %v2401 = vld [vmem:[#allocation8 + $0x2b0] sm:$0xff]
        %v2402 = vld [vmem:[#allocation8 + $0x2b8] sm:$0xff]
        %v2403 = vld [vmem:[#allocation8 + $0x2c0] sm:$0xff]
        %v2404 = vld [vmem:[#allocation8 + $0x2c8] sm:$0xff]
        %v2405 = vld [vmem:[#allocation8 + $0x2d0] sm:$0xff]
        %v2406 = vld [vmem:[#allocation8 + $0x2d8] sm:$0xff]
        %v2407 = vld [vmem:[#allocation8 + $0x2e0] sm:$0xff]
        %v2408 = vld [vmem:[#allocation8 + $0x2e8] sm:$0xff]
        %v2409 = vld [vmem:[#allocation8 + $0x2f0] sm:$0xff]
        %v2410 = vld [vmem:[#allocation8 + $0x2f8] sm:$0xff]
        %v2411 = vld [vmem:[#allocation8 + $0x300] sm:$0xff]
        %v2412 = vld [vmem:[#allocation8 + $0x308] sm:$0xff]
        %v2413 = vld [vmem:[#allocation8 + $0x310] sm:$0xff]
        %v2414 = vld [vmem:[#allocation8 + $0x318] sm:$0xff]
        %v2415 = vld [vmem:[#allocation8 + $0x320] sm:$0xff]
        %v2416 = vld [vmem:[#allocation8 + $0x328] sm:$0xff]
        %v2417 = vld [vmem:[#allocation8 + $0x330] sm:$0xff]
        %v2418 = vld [vmem:[#allocation8 + $0x338] sm:$0xff]
        %v2419 = vld [vmem:[#allocation8 + $0x340] sm:$0xff]
        %v2420 = vld [vmem:[#allocation8 + $0x348] sm:$0xff]
        %v2421 = vld [vmem:[#allocation8 + $0x350] sm:$0xff]
        %v2422 = vld [vmem:[#allocation8 + $0x358] sm:$0xff]
        %v2423 = vld [vmem:[#allocation8 + $0x360] sm:$0xff]
        %v2424 = vld [vmem:[#allocation8 + $0x368] sm:$0xff]
        %v2425 = vld [vmem:[#allocation8 + $0x370] sm:$0xff]
        %v2426 = vld [vmem:[#allocation8 + $0x378] sm:$0xff]
        %v2427 = vld [vmem:[#allocation8 + $0x380] sm:$0xff]
        %v2428 = vld [vmem:[#allocation8 + $0x388] sm:$0xff]
        %v2429 = vld [vmem:[#allocation8 + $0x390] sm:$0xff]
        %v2430 = vld [vmem:[#allocation8 + $0x398] sm:$0xff]
        %v2431 = vld [vmem:[#allocation8 + $0x3a0] sm:$0xff]
        %v2432 = vld [vmem:[#allocation8 + $0x3a8] sm:$0xff]
        %v2433 = vld [vmem:[#allocation8 + $0x3b0] sm:$0xff]
        %v2434 = vld [vmem:[#allocation8 + $0x3b8] sm:$0xff]
        %v2435 = vld [vmem:[#allocation8 + $0x3c0] sm:$0xff]
        %v2436 = vld [vmem:[#allocation8 + $0x3c8] sm:$0xff]
        %v2437 = vld [vmem:[#allocation8 + $0x3d0] sm:$0xff]
        %v2438 = vld [vmem:[#allocation8 + $0x3d8] sm:$0xff]
        %v2439 = vld [vmem:[#allocation8 + $0x3e0] sm:$0xff]
        %v2440 = vld [vmem:[#allocation8 + $0x3e8] sm:$0xff]
        %v2441 = vld [vmem:[#allocation8 + $0x3f0] sm:$0xff]
        %v2442 = vld [vmem:[#allocation8 + $0x3f8] sm:$0xff]
        %v2443 = vld [vmem:[%s4] sm:$0x3]
        %v2445 = vlaneseq
        %v2446 = vshrl.u32 %v2445, 7
        %v2447 = vsub.s32 0, %v2446
        %v2448 = vrot.slane %v2443, %v2447
        %v2449 = vlaneseq
        %v2450 = vshrl.u32 %v2449, 7
        %v2451 = vsub.s32 1, %v2450
        %v2452 = vrot.slane %v2443, %v2451
        %v2583 = vunpack.c.l.b16 %v2315
        %v2584 = vunpack.c.h.b16 %v2315
        %v2585 = vunpack.c.l.b16 %v2316
        %v2586 = vunpack.c.h.b16 %v2316
        %v2587 = vunpack.c.l.b16 %v2317
        %v2588 = vunpack.c.h.b16 %v2317
        %v2589 = vunpack.c.l.b16 %v2318
        %v2590 = vunpack.c.h.b16 %v2318
        %v2591 = vunpack.c.l.b16 %v2319
        %v2592 = vunpack.c.h.b16 %v2319
        %v2593 = vunpack.c.l.b16 %v2320
        %v2594 = vunpack.c.h.b16 %v2320
        %v2595 = vunpack.c.l.b16 %v2321
        %v2596 = vunpack.c.h.b16 %v2321
        %v2597 = vunpack.c.l.b16 %v2322
        %v2598 = vunpack.c.h.b16 %v2322
        %v2599 = vunpack.c.l.b16 %v2323
        %v2600 = vunpack.c.h.b16 %v2323
        %v2601 = vunpack.c.l.b16 %v2324
        %v2602 = vunpack.c.h.b16 %v2324
        %v2603 = vunpack.c.l.b16 %v2325
        %v2604 = vunpack.c.h.b16 %v2325
        %v2605 = vunpack.c.l.b16 %v2326
        %v2606 = vunpack.c.h.b16 %v2326
        %v2607 = vunpack.c.l.b16 %v2327
        %v2608 = vunpack.c.h.b16 %v2327
        %v2609 = vunpack.c.l.b16 %v2328
        %v2610 = vunpack.c.h.b16 %v2328
        %v2611 = vunpack.c.l.b16 %v2329
        %v2612 = vunpack.c.h.b16 %v2329
        %v2613 = vunpack.c.l.b16 %v2330
        %v2614 = vunpack.c.h.b16 %v2330
        %v2615 = vunpack.c.l.b16 %v2331
        %v2616 = vunpack.c.h.b16 %v2331
        %v2617 = vunpack.c.l.b16 %v2332
        %v2618 = vunpack.c.h.b16 %v2332
        %v2619 = vunpack.c.l.b16 %v2333
        %v2620 = vunpack.c.h.b16 %v2333
        %v2621 = vunpack.c.l.b16 %v2334
        %v2622 = vunpack.c.h.b16 %v2334
        %v2623 = vunpack.c.l.b16 %v2335
        %v2624 = vunpack.c.h.b16 %v2335
        %v2625 = vunpack.c.l.b16 %v2336
        %v2626 = vunpack.c.h.b16 %v2336
        %v2627 = vunpack.c.l.b16 %v2337
        %v2628 = vunpack.c.h.b16 %v2337
        %v2629 = vunpack.c.l.b16 %v2338
        %v2630 = vunpack.c.h.b16 %v2338
        %v2631 = vunpack.c.l.b16 %v2339
        %v2632 = vunpack.c.h.b16 %v2339
        %v2633 = vunpack.c.l.b16 %v2340
        %v2634 = vunpack.c.h.b16 %v2340
        %v2635 = vunpack.c.l.b16 %v2341
        %v2636 = vunpack.c.h.b16 %v2341
        %v2637 = vunpack.c.l.b16 %v2342
        %v2638 = vunpack.c.h.b16 %v2342
        %v2639 = vunpack.c.l.b16 %v2343
        %v2640 = vunpack.c.h.b16 %v2343
        %v2641 = vunpack.c.l.b16 %v2344
        %v2642 = vunpack.c.h.b16 %v2344
        %v2643 = vunpack.c.l.b16 %v2345
        %v2644 = vunpack.c.h.b16 %v2345
        %v2645 = vunpack.c.l.b16 %v2346
        %v2646 = vunpack.c.h.b16 %v2346
        %v2647 = vunpack.c.l.b16 %v2347
        %v2648 = vunpack.c.h.b16 %v2347
        %v2649 = vunpack.c.l.b16 %v2348
        %v2650 = vunpack.c.h.b16 %v2348
        %v2651 = vunpack.c.l.b16 %v2349
        %v2652 = vunpack.c.h.b16 %v2349
        %v2653 = vunpack.c.l.b16 %v2350
        %v2654 = vunpack.c.h.b16 %v2350
        %v2655 = vunpack.c.l.b16 %v2351
        %v2656 = vunpack.c.h.b16 %v2351
        %v2657 = vunpack.c.l.b16 %v2352
        %v2658 = vunpack.c.h.b16 %v2352
        %v2659 = vunpack.c.l.b16 %v2353
        %v2660 = vunpack.c.h.b16 %v2353
        %v2661 = vunpack.c.l.b16 %v2354
        %v2662 = vunpack.c.h.b16 %v2354
        %v2663 = vunpack.c.l.b16 %v2355
        %v2664 = vunpack.c.h.b16 %v2355
        %v2665 = vunpack.c.l.b16 %v2356
        %v2666 = vunpack.c.h.b16 %v2356
        %v2667 = vunpack.c.l.b16 %v2357
        %v2668 = vunpack.c.h.b16 %v2357
        %v2669 = vunpack.c.l.b16 %v2358
        %v2670 = vunpack.c.h.b16 %v2358
        %v2671 = vunpack.c.l.b16 %v2359
        %v2672 = vunpack.c.h.b16 %v2359
        %v2673 = vunpack.c.l.b16 %v2360
        %v2674 = vunpack.c.h.b16 %v2360
        %v2675 = vunpack.c.l.b16 %v2361
        %v2676 = vunpack.c.h.b16 %v2361
        %v2677 = vunpack.c.l.b16 %v2362
        %v2678 = vunpack.c.h.b16 %v2362
        %v2679 = vunpack.c.l.b16 %v2363
        %v2680 = vunpack.c.h.b16 %v2363
        %v2681 = vunpack.c.l.b16 %v2364
        %v2682 = vunpack.c.h.b16 %v2364
        %v2683 = vunpack.c.l.b16 %v2365
        %v2684 = vunpack.c.h.b16 %v2365
        %v2685 = vunpack.c.l.b16 %v2366
        %v2686 = vunpack.c.h.b16 %v2366
        %v2687 = vunpack.c.l.b16 %v2367
        %v2688 = vunpack.c.h.b16 %v2367
        %v2689 = vunpack.c.l.b16 %v2368
        %v2690 = vunpack.c.h.b16 %v2368
        %v2691 = vunpack.c.l.b16 %v2369
        %v2692 = vunpack.c.h.b16 %v2369
        %v2693 = vunpack.c.l.b16 %v2370
        %v2694 = vunpack.c.h.b16 %v2370
        %v2695 = vunpack.c.l.b16 %v2371
        %v2696 = vunpack.c.h.b16 %v2371
        %v2697 = vunpack.c.l.b16 %v2372
        %v2698 = vunpack.c.h.b16 %v2372
        %v2699 = vunpack.c.l.b16 %v2373
        %v2700 = vunpack.c.h.b16 %v2373
        %v2701 = vunpack.c.l.b16 %v2374
        %v2702 = vunpack.c.h.b16 %v2374
        %v2703 = vunpack.c.l.b16 %v2375
        %v2704 = vunpack.c.h.b16 %v2375
        %v2705 = vunpack.c.l.b16 %v2376
        %v2706 = vunpack.c.h.b16 %v2376
        %v2707 = vunpack.c.l.b16 %v2377
        %v2708 = vunpack.c.h.b16 %v2377
        %v2709 = vunpack.c.l.b16 %v2378
        %v2710 = vunpack.c.h.b16 %v2378
        %v2711 = vunpack.c.l.b16 %v2379
        %v2712 = vunpack.c.h.b16 %v2379
        %v2713 = vunpack.c.l.b16 %v2380
        %v2714 = vunpack.c.h.b16 %v2380
        %v2715 = vunpack.c.l.b16 %v2381
        %v2716 = vunpack.c.h.b16 %v2381
        %v2717 = vunpack.c.l.b16 %v2382
        %v2718 = vunpack.c.h.b16 %v2382
        %v2719 = vunpack.c.l.b16 %v2383
        %v2720 = vunpack.c.h.b16 %v2383
        %v2721 = vunpack.c.l.b16 %v2384
        %v2722 = vunpack.c.h.b16 %v2384
        %v2723 = vunpack.c.l.b16 %v2385
        %v2724 = vunpack.c.h.b16 %v2385
        %v2725 = vunpack.c.l.b16 %v2386
        %v2726 = vunpack.c.h.b16 %v2386
        %v2727 = vunpack.c.l.b16 %v2387
        %v2728 = vunpack.c.h.b16 %v2387
        %v2729 = vunpack.c.l.b16 %v2388
        %v2730 = vunpack.c.h.b16 %v2388
        %v2731 = vunpack.c.l.b16 %v2389
        %v2732 = vunpack.c.h.b16 %v2389
        %v2733 = vunpack.c.l.b16 %v2390
        %v2734 = vunpack.c.h.b16 %v2390
        %v2735 = vunpack.c.l.b16 %v2391
        %v2736 = vunpack.c.h.b16 %v2391
        %v2737 = vunpack.c.l.b16 %v2392
        %v2738 = vunpack.c.h.b16 %v2392
        %v2739 = vunpack.c.l.b16 %v2393
        %v2740 = vunpack.c.h.b16 %v2393
        %v2741 = vunpack.c.l.b16 %v2394
        %v2742 = vunpack.c.h.b16 %v2394
        %v2743 = vunpack.c.l.b16 %v2395
        %v2744 = vunpack.c.h.b16 %v2395
        %v2745 = vunpack.c.l.b16 %v2396
        %v2746 = vunpack.c.h.b16 %v2396
        %v2747 = vunpack.c.l.b16 %v2397
        %v2748 = vunpack.c.h.b16 %v2397
        %v2749 = vunpack.c.l.b16 %v2398
        %v2750 = vunpack.c.h.b16 %v2398
        %v2751 = vunpack.c.l.b16 %v2399
        %v2752 = vunpack.c.h.b16 %v2399
        %v2753 = vunpack.c.l.b16 %v2400
        %v2754 = vunpack.c.h.b16 %v2400
        %v2755 = vunpack.c.l.b16 %v2401
        %v2756 = vunpack.c.h.b16 %v2401
        %v2757 = vunpack.c.l.b16 %v2402
        %v2758 = vunpack.c.h.b16 %v2402
        %v2759 = vunpack.c.l.b16 %v2403
        %v2760 = vunpack.c.h.b16 %v2403
        %v2761 = vunpack.c.l.b16 %v2404
        %v2762 = vunpack.c.h.b16 %v2404
        %v2763 = vunpack.c.l.b16 %v2405
        %v2764 = vunpack.c.h.b16 %v2405
        %v2765 = vunpack.c.l.b16 %v2406
        %v2766 = vunpack.c.h.b16 %v2406
        %v2767 = vunpack.c.l.b16 %v2407
        %v2768 = vunpack.c.h.b16 %v2407
        %v2769 = vunpack.c.l.b16 %v2408
        %v2770 = vunpack.c.h.b16 %v2408
        %v2771 = vunpack.c.l.b16 %v2409
        %v2772 = vunpack.c.h.b16 %v2409
        %v2773 = vunpack.c.l.b16 %v2410
        %v2774 = vunpack.c.h.b16 %v2410
        %v2775 = vunpack.c.l.b16 %v2411
        %v2776 = vunpack.c.h.b16 %v2411
        %v2777 = vunpack.c.l.b16 %v2412
        %v2778 = vunpack.c.h.b16 %v2412
        %v2779 = vunpack.c.l.b16 %v2413
        %v2780 = vunpack.c.h.b16 %v2413
        %v2781 = vunpack.c.l.b16 %v2414
        %v2782 = vunpack.c.h.b16 %v2414
        %v2783 = vunpack.c.l.b16 %v2415
        %v2784 = vunpack.c.h.b16 %v2415
        %v2785 = vunpack.c.l.b16 %v2416
        %v2786 = vunpack.c.h.b16 %v2416
        %v2787 = vunpack.c.l.b16 %v2417
        %v2788 = vunpack.c.h.b16 %v2417
        %v2789 = vunpack.c.l.b16 %v2418
        %v2790 = vunpack.c.h.b16 %v2418
        %v2791 = vunpack.c.l.b16 %v2419
        %v2792 = vunpack.c.h.b16 %v2419
        %v2793 = vunpack.c.l.b16 %v2420
        %v2794 = vunpack.c.h.b16 %v2420
        %v2795 = vunpack.c.l.b16 %v2421
        %v2796 = vunpack.c.h.b16 %v2421
        %v2797 = vunpack.c.l.b16 %v2422
        %v2798 = vunpack.c.h.b16 %v2422
        %v2799 = vunpack.c.l.b16 %v2423
        %v2800 = vunpack.c.h.b16 %v2423
        %v2801 = vunpack.c.l.b16 %v2424
        %v2802 = vunpack.c.h.b16 %v2424
        %v2803 = vunpack.c.l.b16 %v2425
        %v2804 = vunpack.c.h.b16 %v2425
        %v2805 = vunpack.c.l.b16 %v2426
        %v2806 = vunpack.c.h.b16 %v2426
        %v2807 = vunpack.c.l.b16 %v2427
        %v2808 = vunpack.c.h.b16 %v2427
        %v2809 = vunpack.c.l.b16 %v2428
        %v2810 = vunpack.c.h.b16 %v2428
        %v2811 = vunpack.c.l.b16 %v2429
        %v2812 = vunpack.c.h.b16 %v2429
        %v2813 = vunpack.c.l.b16 %v2430
        %v2814 = vunpack.c.h.b16 %v2430
        %v2815 = vunpack.c.l.b16 %v2431
        %v2816 = vunpack.c.h.b16 %v2431
        %v2817 = vunpack.c.l.b16 %v2432
        %v2818 = vunpack.c.h.b16 %v2432
        %v2819 = vunpack.c.l.b16 %v2433
        %v2820 = vunpack.c.h.b16 %v2433
        %v2821 = vunpack.c.l.b16 %v2434
        %v2822 = vunpack.c.h.b16 %v2434
        %v2823 = vunpack.c.l.b16 %v2435
        %v2824 = vunpack.c.h.b16 %v2435
        %v2825 = vunpack.c.l.b16 %v2436
        %v2826 = vunpack.c.h.b16 %v2436
        %v2827 = vunpack.c.l.b16 %v2437
        %v2828 = vunpack.c.h.b16 %v2437
        %v2829 = vunpack.c.l.b16 %v2438
        %v2830 = vunpack.c.h.b16 %v2438
        %v2831 = vunpack.c.l.b16 %v2439
        %v2832 = vunpack.c.h.b16 %v2439
        %v2833 = vunpack.c.l.b16 %v2440
        %v2834 = vunpack.c.h.b16 %v2440
        %v2835 = vunpack.c.l.b16 %v2441
        %v2836 = vunpack.c.h.b16 %v2441
        %v2837 = vunpack.c.l.b16 %v2442
        %v2838 = vunpack.c.h.b16 %v2442
        %v2839 = vpack.c.b16 %v2585, %v2583
        %v2840 = vpack.c.b16 %v2586, %v2584
        %v2841 = vpack.c.b16 %v2589, %v2587
        %v2842 = vpack.c.b16 %v2590, %v2588
        %v2843 = vpack.c.b16 %v2593, %v2591
        %v2844 = vpack.c.b16 %v2594, %v2592
        %v2845 = vpack.c.b16 %v2597, %v2595
        %v2846 = vpack.c.b16 %v2598, %v2596
        %v2847 = vpack.c.b16 %v2601, %v2599
        %v2848 = vpack.c.b16 %v2602, %v2600
        %v2849 = vpack.c.b16 %v2605, %v2603
        %v2850 = vpack.c.b16 %v2606, %v2604
        %v2851 = vpack.c.b16 %v2609, %v2607
        %v2852 = vpack.c.b16 %v2610, %v2608
        %v2853 = vpack.c.b16 %v2613, %v2611
        %v2854 = vpack.c.b16 %v2614, %v2612
        %v2855 = vpack.c.b16 %v2617, %v2615
        %v2856 = vpack.c.b16 %v2618, %v2616
        %v2857 = vpack.c.b16 %v2621, %v2619
        %v2858 = vpack.c.b16 %v2622, %v2620
        %v2859 = vpack.c.b16 %v2625, %v2623
        %v2860 = vpack.c.b16 %v2626, %v2624
        %v2861 = vpack.c.b16 %v2629, %v2627
        %v2862 = vpack.c.b16 %v2630, %v2628
        %v2863 = vpack.c.b16 %v2633, %v2631
        %v2864 = vpack.c.b16 %v2634, %v2632
        %v2865 = vpack.c.b16 %v2637, %v2635
        %v2866 = vpack.c.b16 %v2638, %v2636
        %v2867 = vpack.c.b16 %v2641, %v2639
        %v2868 = vpack.c.b16 %v2642, %v2640
        %v2869 = vpack.c.b16 %v2645, %v2643
        %v2870 = vpack.c.b16 %v2646, %v2644
        %v2871 = vpack.c.b16 %v2649, %v2647
        %v2872 = vpack.c.b16 %v2650, %v2648
        %v2873 = vpack.c.b16 %v2653, %v2651
        %v2874 = vpack.c.b16 %v2654, %v2652
        %v2875 = vpack.c.b16 %v2657, %v2655
        %v2876 = vpack.c.b16 %v2658, %v2656
        %v2877 = vpack.c.b16 %v2661, %v2659
        %v2878 = vpack.c.b16 %v2662, %v2660
        %v2879 = vpack.c.b16 %v2665, %v2663
        %v2880 = vpack.c.b16 %v2666, %v2664
        %v2881 = vpack.c.b16 %v2669, %v2667
        %v2882 = vpack.c.b16 %v2670, %v2668
        %v2883 = vpack.c.b16 %v2673, %v2671
        %v2884 = vpack.c.b16 %v2674, %v2672
        %v2885 = vpack.c.b16 %v2677, %v2675
        %v2886 = vpack.c.b16 %v2678, %v2676
        %v2887 = vpack.c.b16 %v2681, %v2679
        %v2888 = vpack.c.b16 %v2682, %v2680
        %v2889 = vpack.c.b16 %v2685, %v2683
        %v2890 = vpack.c.b16 %v2686, %v2684
        %v2891 = vpack.c.b16 %v2689, %v2687
        %v2892 = vpack.c.b16 %v2690, %v2688
        %v2893 = vpack.c.b16 %v2693, %v2691
        %v2894 = vpack.c.b16 %v2694, %v2692
        %v2895 = vpack.c.b16 %v2697, %v2695
        %v2896 = vpack.c.b16 %v2698, %v2696
        %v2897 = vpack.c.b16 %v2701, %v2699
        %v2898 = vpack.c.b16 %v2702, %v2700
        %v2899 = vpack.c.b16 %v2705, %v2703
        %v2900 = vpack.c.b16 %v2706, %v2704
        %v2901 = vpack.c.b16 %v2709, %v2707
        %v2902 = vpack.c.b16 %v2710, %v2708
        %v2903 = vpack.c.b16 %v2713, %v2711
        %v2904 = vpack.c.b16 %v2714, %v2712
        %v2905 = vpack.c.b16 %v2717, %v2715
        %v2906 = vpack.c.b16 %v2718, %v2716
        %v2907 = vpack.c.b16 %v2721, %v2719
        %v2908 = vpack.c.b16 %v2722, %v2720
        %v2909 = vpack.c.b16 %v2725, %v2723
        %v2910 = vpack.c.b16 %v2726, %v2724
        %v2911 = vpack.c.b16 %v2729, %v2727
        %v2912 = vpack.c.b16 %v2730, %v2728
        %v2913 = vpack.c.b16 %v2733, %v2731
        %v2914 = vpack.c.b16 %v2734, %v2732
        %v2915 = vpack.c.b16 %v2737, %v2735
        %v2916 = vpack.c.b16 %v2738, %v2736
        %v2917 = vpack.c.b16 %v2741, %v2739
        %v2918 = vpack.c.b16 %v2742, %v2740
        %v2919 = vpack.c.b16 %v2745, %v2743
        %v2920 = vpack.c.b16 %v2746, %v2744
        %v2921 = vpack.c.b16 %v2749, %v2747
        %v2922 = vpack.c.b16 %v2750, %v2748
        %v2923 = vpack.c.b16 %v2753, %v2751
        %v2924 = vpack.c.b16 %v2754, %v2752
        %v2925 = vpack.c.b16 %v2757, %v2755
        %v2926 = vpack.c.b16 %v2758, %v2756
        %v2927 = vpack.c.b16 %v2761, %v2759
        %v2928 = vpack.c.b16 %v2762, %v2760
        %v2929 = vpack.c.b16 %v2765, %v2763
        %v2930 = vpack.c.b16 %v2766, %v2764
        %v2931 = vpack.c.b16 %v2769, %v2767
        %v2932 = vpack.c.b16 %v2770, %v2768
        %v2933 = vpack.c.b16 %v2773, %v2771
        %v2934 = vpack.c.b16 %v2774, %v2772
        %v2935 = vpack.c.b16 %v2777, %v2775
        %v2936 = vpack.c.b16 %v2778, %v2776
        %v2937 = vpack.c.b16 %v2781, %v2779
        %v2938 = vpack.c.b16 %v2782, %v2780
        %v2939 = vpack.c.b16 %v2785, %v2783
        %v2940 = vpack.c.b16 %v2786, %v2784
        %v2941 = vpack.c.b16 %v2789, %v2787
        %v2942 = vpack.c.b16 %v2790, %v2788
        %v2943 = vpack.c.b16 %v2793, %v2791
        %v2944 = vpack.c.b16 %v2794, %v2792
        %v2945 = vpack.c.b16 %v2797, %v2795
        %v2946 = vpack.c.b16 %v2798, %v2796
        %v2947 = vpack.c.b16 %v2801, %v2799
        %v2948 = vpack.c.b16 %v2802, %v2800
        %v2949 = vpack.c.b16 %v2805, %v2803
        %v2950 = vpack.c.b16 %v2806, %v2804
        %v2951 = vpack.c.b16 %v2809, %v2807
        %v2952 = vpack.c.b16 %v2810, %v2808
        %v2953 = vpack.c.b16 %v2813, %v2811
        %v2954 = vpack.c.b16 %v2814, %v2812
        %v2955 = vpack.c.b16 %v2817, %v2815
        %v2956 = vpack.c.b16 %v2818, %v2816
        %v2957 = vpack.c.b16 %v2821, %v2819
        %v2958 = vpack.c.b16 %v2822, %v2820
        %v2959 = vpack.c.b16 %v2825, %v2823
        %v2960 = vpack.c.b16 %v2826, %v2824
        %v2961 = vpack.c.b16 %v2829, %v2827
        %v2962 = vpack.c.b16 %v2830, %v2828
        %v2963 = vpack.c.b16 %v2833, %v2831
        %v2964 = vpack.c.b16 %v2834, %v2832
        %v2965 = vpack.c.b16 %v2837, %v2835
        %v2966 = vpack.c.b16 %v2838, %v2836
        %3095 = vmatprep.subr.bf16.mxu0 %v2854
        %3096 = vmatpush1.bf16.msra.mxu0 %v2853
        %3097 = vmatprep.subr.bf16.mxu0 %v2852
        %3098 = vmatpush1.bf16.msra.mxu0 %v2851
        %3099 = vmatprep.subr.bf16.mxu0 %v2850
        %3100 = vmatpush1.bf16.msra.mxu0 %v2849
        %3101 = vmatprep.subr.bf16.mxu0 %v2848
        %3102 = vmatpush1.bf16.msra.mxu0 %v2847
        %3103 = vmatprep.subr.bf16.mxu0 %v2846
        %3104 = vmatpush1.bf16.msra.mxu0 %v2845
        %3105 = vmatprep.subr.bf16.mxu0 %v2844
        %3106 = vmatpush1.bf16.msra.mxu0 %v2843
        %3107 = vmatprep.subr.bf16.mxu0 %v2842
        %3108 = vmatpush1.bf16.msra.mxu0 %v2841
        %3109 = vmatprep.subr.bf16.mxu0 %v2840
        %3110 = vmatpush1.bf16.msra.mxu0 %v2839
        %3111 = vmatprep.subr.bf16.mxu0 %v2870
        %3112 = vmatpush2.bf16.msra.mxu0 %v2869
        %3113 = vmatprep.subr.bf16.mxu0 %v2868
        %3114 = vmatpush2.bf16.msra.mxu0 %v2867
        %3115 = vmatprep.subr.bf16.mxu0 %v2866
        %3116 = vmatpush2.bf16.msra.mxu0 %v2865
        %3117 = vmatprep.subr.bf16.mxu0 %v2864
        %3118 = vmatpush2.bf16.msra.mxu0 %v2863
        %3119 = vmatprep.subr.bf16.mxu0 %v2862
        %3120 = vmatpush2.bf16.msra.mxu0 %v2861
        %3121 = vmatprep.subr.bf16.mxu0 %v2860
        %3122 = vmatpush2.bf16.msra.mxu0 %v2859
        %3123 = vmatprep.subr.bf16.mxu0 %v2858
        %3124 = vmatpush2.bf16.msra.mxu0 %v2857
        %3125 = vmatprep.subr.bf16.mxu0 %v2856
        %3126 = vmatpush2.bf16.msra.mxu0 %v2855
        %3127 = vmatprep.mubr.bf16.mxu0 %v2308
        %3128 = vmatmul.mubr.bf16.gmra.mxu0 %v2307
        %v3129 = vpop.f32.mrf.mxu0
        %v3130 = vadd.f32 %v2448, %v3129
        %v3131 = vpop.f32.mrf.mxu0
        %v3132 = vadd.f32 %v2452, %v3131
        %v3133 = vpop.f32.mrf.mxu0
        %v3134 = vadd.f32 %v2448, %v3133
        %v3135 = vpop.f32.mrf.mxu0
        %v3136 = vadd.f32 %v2452, %v3135
        %3137 = vdwg.mxu0
        %3138 = vmatprep.subr.bf16.mxu0 %v2886
        %3139 = vmatpush1.bf16.msra.mxu0 %v2885
        %3140 = vmatprep.subr.bf16.mxu0 %v2884
        %3141 = vmatpush1.bf16.msra.mxu0 %v2883
        %3142 = vmatprep.subr.bf16.mxu0 %v2882
        %3143 = vmatpush1.bf16.msra.mxu0 %v2881
        %3144 = vmatprep.subr.bf16.mxu0 %v2880
        %3145 = vmatpush1.bf16.msra.mxu0 %v2879
        %3146 = vmatprep.subr.bf16.mxu0 %v2878
        %3147 = vmatpush1.bf16.msra.mxu0 %v2877
        %3148 = vmatprep.subr.bf16.mxu0 %v2876
        %3149 = vmatpush1.bf16.msra.mxu0 %v2875
        %3150 = vmatprep.subr.bf16.mxu0 %v2874
        %3151 = vmatpush1.bf16.msra.mxu0 %v2873
        %3152 = vmatprep.subr.bf16.mxu0 %v2872
        %3153 = vmatpush1.bf16.msra.mxu0 %v2871
        %3154 = vmatprep.subr.bf16.mxu0 %v2902
        %3155 = vmatpush2.bf16.msra.mxu0 %v2901
        %3156 = vmatprep.subr.bf16.mxu0 %v2900
        %3157 = vmatpush2.bf16.msra.mxu0 %v2899
        %3158 = vmatprep.subr.bf16.mxu0 %v2898
        %3159 = vmatpush2.bf16.msra.mxu0 %v2897
        %3160 = vmatprep.subr.bf16.mxu0 %v2896
        %3161 = vmatpush2.bf16.msra.mxu0 %v2895
        %3162 = vmatprep.subr.bf16.mxu0 %v2894
        %3163 = vmatpush2.bf16.msra.mxu0 %v2893
        %3164 = vmatprep.subr.bf16.mxu0 %v2892
        %3165 = vmatpush2.bf16.msra.mxu0 %v2891
        %3166 = vmatprep.subr.bf16.mxu0 %v2890
        %3167 = vmatpush2.bf16.msra.mxu0 %v2889
        %3168 = vmatprep.subr.bf16.mxu0 %v2888
        %3169 = vmatpush2.bf16.msra.mxu0 %v2887
        %3170 = vmatprep.mubr.bf16.mxu0 %v2310
        %3171 = vmatmul.mubr.bf16.gmra.mxu0 %v2309
        %v3172 = vpop.f32.mrf.mxu0
        %v3173 = vadd.f32 %v3130, %v3172
        %v3174 = vpop.f32.mrf.mxu0
        %v3175 = vadd.f32 %v3132, %v3174
        %v3176 = vpop.f32.mrf.mxu0
        %v3177 = vadd.f32 %v3134, %v3176
        %v3178 = vpop.f32.mrf.mxu0
        %v3179 = vadd.f32 %v3136, %v3178
        %3180 = vdwg.mxu0
        %3181 = vmatprep.subr.bf16.mxu0 %v2918
        %3182 = vmatpush1.bf16.msra.mxu0 %v2917
        %3183 = vmatprep.subr.bf16.mxu0 %v2916
        %3184 = vmatpush1.bf16.msra.mxu0 %v2915
        %3185 = vmatprep.subr.bf16.mxu0 %v2914
        %3186 = vmatpush1.bf16.msra.mxu0 %v2913
        %3187 = vmatprep.subr.bf16.mxu0 %v2912
        %3188 = vmatpush1.bf16.msra.mxu0 %v2911
        %3189 = vmatprep.subr.bf16.mxu0 %v2910
        %3190 = vmatpush1.bf16.msra.mxu0 %v2909
        %3191 = vmatprep.subr.bf16.mxu0 %v2908
        %3192 = vmatpush1.bf16.msra.mxu0 %v2907
        %3193 = vmatprep.subr.bf16.mxu0 %v2906
        %3194 = vmatpush1.bf16.msra.mxu0 %v2905
        %3195 = vmatprep.subr.bf16.mxu0 %v2904
        %3196 = vmatpush1.bf16.msra.mxu0 %v2903
        %3197 = vmatprep.subr.bf16.mxu0 %v2934
        %3198 = vmatpush2.bf16.msra.mxu0 %v2933
        %3199 = vmatprep.subr.bf16.mxu0 %v2932
        %3200 = vmatpush2.bf16.msra.mxu0 %v2931
        %3201 = vmatprep.subr.bf16.mxu0 %v2930
        %3202 = vmatpush2.bf16.msra.mxu0 %v2929
        %3203 = vmatprep.subr.bf16.mxu0 %v2928
        %3204 = vmatpush2.bf16.msra.mxu0 %v2927
        %3205 = vmatprep.subr.bf16.mxu0 %v2926
        %3206 = vmatpush2.bf16.msra.mxu0 %v2925
        %3207 = vmatprep.subr.bf16.mxu0 %v2924
        %3208 = vmatpush2.bf16.msra.mxu0 %v2923
        %3209 = vmatprep.subr.bf16.mxu0 %v2922
        %3210 = vmatpush2.bf16.msra.mxu0 %v2921
        %3211 = vmatprep.subr.bf16.mxu0 %v2920
        %3212 = vmatpush2.bf16.msra.mxu0 %v2919
        %3213 = vmatprep.mubr.bf16.mxu0 %v2312
        %3214 = vmatmul.mubr.bf16.gmra.mxu0 %v2311
        %v3215 = vpop.f32.mrf.mxu0
        %v3216 = vadd.f32 %v3173, %v3215
        %v3217 = vpop.f32.mrf.mxu0
        %v3218 = vadd.f32 %v3175, %v3217
        %v3219 = vpop.f32.mrf.mxu0
        %v3220 = vadd.f32 %v3177, %v3219
        %v3221 = vpop.f32.mrf.mxu0
        %v3222 = vadd.f32 %v3179, %v3221
        %3223 = vdwg.mxu0
        %3224 = vmatprep.subr.bf16.mxu0 %v2950
        %3225 = vmatpush1.bf16.msra.mxu0 %v2949
        %3226 = vmatprep.subr.bf16.mxu0 %v2948
        %3227 = vmatpush1.bf16.msra.mxu0 %v2947
        %3228 = vmatprep.subr.bf16.mxu0 %v2946
        %3229 = vmatpush1.bf16.msra.mxu0 %v2945
        %3230 = vmatprep.subr.bf16.mxu0 %v2944
        %3231 = vmatpush1.bf16.msra.mxu0 %v2943
        %3232 = vmatprep.subr.bf16.mxu0 %v2942
        %3233 = vmatpush1.bf16.msra.mxu0 %v2941
        %3234 = vmatprep.subr.bf16.mxu0 %v2940
        %3235 = vmatpush1.bf16.msra.mxu0 %v2939
        %3236 = vmatprep.subr.bf16.mxu0 %v2938
        %3237 = vmatpush1.bf16.msra.mxu0 %v2937
        %3238 = vmatprep.subr.bf16.mxu0 %v2936
        %3239 = vmatpush1.bf16.msra.mxu0 %v2935
        %3240 = vmatprep.subr.bf16.mxu0 %v2966
        %3241 = vmatpush2.bf16.msra.mxu0 %v2965
        %3242 = vmatprep.subr.bf16.mxu0 %v2964
        %3243 = vmatpush2.bf16.msra.mxu0 %v2963
        %3244 = vmatprep.subr.bf16.mxu0 %v2962
        %3245 = vmatpush2.bf16.msra.mxu0 %v2961
        %3246 = vmatprep.subr.bf16.mxu0 %v2960
        %3247 = vmatpush2.bf16.msra.mxu0 %v2959
        %3248 = vmatprep.subr.bf16.mxu0 %v2958
        %3249 = vmatpush2.bf16.msra.mxu0 %v2957
        %3250 = vmatprep.subr.bf16.mxu0 %v2956
        %3251 = vmatpush2.bf16.msra.mxu0 %v2955
        %3252 = vmatprep.subr.bf16.mxu0 %v2954
        %3253 = vmatpush2.bf16.msra.mxu0 %v2953
        %3254 = vmatprep.subr.bf16.mxu0 %v2952
        %3255 = vmatpush2.bf16.msra.mxu0 %v2951
        %3256 = vmatprep.mubr.bf16.mxu0 %v2314
        %3257 = vmatmul.mubr.bf16.gmra.mxu0 %v2313
        %v3258 = vpop.f32.mrf.mxu0
        %v3259 = vadd.f32 %v3216, %v3258
        %v3260 = vpop.f32.mrf.mxu0
        %v3261 = vadd.f32 %v3218, %v3260
        %v3262 = vpop.f32.mrf.mxu0
        %v3263 = vadd.f32 %v3220, %v3262
        %v3264 = vpop.f32.mrf.mxu0
        %v3265 = vadd.f32 %v3222, %v3264
        %3266 = vdwg.mxu0
        %v3267 = vmax.f32 %v3259, 0.0
        %v3268 = vmax.f32 %v3261, 0.0
        %v3269 = vmax.f32 %v3263, 0.0
        %v3270 = vmax.f32 %v3265, 0.0
        %v3271 = vpack.c.bf16 %v3269, %v3267
        %v3272 = vpack.c.bf16 %v3270, %v3268
        %v3273 = vld [vmem:[#allocation10] sm:$0xf]
        %v3274 = vld [vmem:[#allocation10 + $0x4] sm:$0xf]
        %v3275 = vld [vmem:[#allocation10 + $0x8] sm:$0xf]
        %v3276 = vld [vmem:[#allocation10 + $0xc] sm:$0xf]
        %v3277 = vld [vmem:[#allocation10 + $0x10] sm:$0xf]
        %v3278 = vld [vmem:[#allocation10 + $0x14] sm:$0xf]
        %v3279 = vld [vmem:[#allocation10 + $0x18] sm:$0xf]
        %v3280 = vld [vmem:[#allocation10 + $0x1c] sm:$0xf]
        %v3281 = vld [vmem:[#allocation10 + $0x20] sm:$0xf]
        %v3282 = vld [vmem:[#allocation10 + $0x24] sm:$0xf]
        %v3283 = vld [vmem:[#allocation10 + $0x28] sm:$0xf]
        %v3284 = vld [vmem:[#allocation10 + $0x2c] sm:$0xf]
        %v3285 = vld [vmem:[#allocation10 + $0x30] sm:$0xf]
        %v3286 = vld [vmem:[#allocation10 + $0x34] sm:$0xf]
        %v3287 = vld [vmem:[#allocation10 + $0x38] sm:$0xf]
        %v3288 = vld [vmem:[#allocation10 + $0x3c] sm:$0xf]
        %v3289 = vld [vmem:[#allocation10 + $0x40] sm:$0xf]
        %v3290 = vld [vmem:[#allocation10 + $0x44] sm:$0xf]
        %v3291 = vld [vmem:[#allocation10 + $0x48] sm:$0xf]
        %v3292 = vld [vmem:[#allocation10 + $0x4c] sm:$0xf]
        %v3293 = vld [vmem:[#allocation10 + $0x50] sm:$0xf]
        %v3294 = vld [vmem:[#allocation10 + $0x54] sm:$0xf]
        %v3295 = vld [vmem:[#allocation10 + $0x58] sm:$0xf]
        %v3296 = vld [vmem:[#allocation10 + $0x5c] sm:$0xf]
        %v3297 = vld [vmem:[#allocation10 + $0x60] sm:$0xf]
        %v3298 = vld [vmem:[#allocation10 + $0x64] sm:$0xf]
        %v3299 = vld [vmem:[#allocation10 + $0x68] sm:$0xf]
        %v3300 = vld [vmem:[#allocation10 + $0x6c] sm:$0xf]
        %v3301 = vld [vmem:[#allocation10 + $0x70] sm:$0xf]
        %v3302 = vld [vmem:[#allocation10 + $0x74] sm:$0xf]
        %v3303 = vld [vmem:[#allocation10 + $0x78] sm:$0xf]
        %v3304 = vld [vmem:[#allocation10 + $0x7c] sm:$0xf]
        %v3305 = vld [vmem:[%s6] sm:$0x1]
        %v3307 = vlaneseq
        %v3308 = vshrl.u32 %v3307, 7
        %v3309 = vsub.s32 0, %v3308
        %v3310 = vrot.slane %v3305, %v3309
        %v3344 = vunpack.c.l.b16 %v3273
        %v3345 = vunpack.c.l.b16 %v3274
        %v3346 = vunpack.c.l.b16 %v3275
        %v3347 = vunpack.c.l.b16 %v3276
        %v3348 = vunpack.c.l.b16 %v3277
        %v3349 = vunpack.c.l.b16 %v3278
        %v3350 = vunpack.c.l.b16 %v3279
        %v3351 = vunpack.c.l.b16 %v3280
        %v3352 = vunpack.c.l.b16 %v3281
        %v3353 = vunpack.c.l.b16 %v3282
        %v3354 = vunpack.c.l.b16 %v3283
        %v3355 = vunpack.c.l.b16 %v3284
        %v3356 = vunpack.c.l.b16 %v3285
        %v3357 = vunpack.c.l.b16 %v3286
        %v3358 = vunpack.c.l.b16 %v3287
        %v3359 = vunpack.c.l.b16 %v3288
        %v3360 = vunpack.c.l.b16 %v3289
        %v3361 = vunpack.c.l.b16 %v3290
        %v3362 = vunpack.c.l.b16 %v3291
        %v3363 = vunpack.c.l.b16 %v3292
        %v3364 = vunpack.c.l.b16 %v3293
        %v3365 = vunpack.c.l.b16 %v3294
        %v3366 = vunpack.c.l.b16 %v3295
        %v3367 = vunpack.c.l.b16 %v3296
        %v3368 = vunpack.c.l.b16 %v3297
        %v3369 = vunpack.c.l.b16 %v3298
        %v3370 = vunpack.c.l.b16 %v3299
        %v3371 = vunpack.c.l.b16 %v3300
        %v3372 = vunpack.c.l.b16 %v3301
        %v3373 = vunpack.c.l.b16 %v3302
        %v3374 = vunpack.c.l.b16 %v3303
        %v3375 = vunpack.c.l.b16 %v3304
        %v3376 = vpack.c.b16 %v3345, %v3344
        %v3377 = vpack.c.b16 %v3347, %v3346
        %v3378 = vpack.c.b16 %v3349, %v3348
        %v3379 = vpack.c.b16 %v3351, %v3350
        %v3380 = vpack.c.b16 %v3353, %v3352
        %v3381 = vpack.c.b16 %v3355, %v3354
        %v3382 = vpack.c.b16 %v3357, %v3356
        %v3383 = vpack.c.b16 %v3359, %v3358
        %v3384 = vpack.c.b16 %v3361, %v3360
        %v3385 = vpack.c.b16 %v3363, %v3362
        %v3386 = vpack.c.b16 %v3365, %v3364
        %v3387 = vpack.c.b16 %v3367, %v3366
        %v3388 = vpack.c.b16 %v3369, %v3368
        %v3389 = vpack.c.b16 %v3371, %v3370
        %v3390 = vpack.c.b16 %v3373, %v3372
        %v3391 = vpack.c.b16 %v3375, %v3374
        %3408 = vmatprep.subr.bf16.mxu0 0
        %3409 = vmatpush1.bf16.msra.mxu0 %v3383
        %3410 = vmatprep.subr.bf16.mxu0 0
        %3411 = vmatpush1.bf16.msra.mxu0 %v3382
        %3412 = vmatprep.subr.bf16.mxu0 0
        %3413 = vmatpush1.bf16.msra.mxu0 %v3381
        %3414 = vmatprep.subr.bf16.mxu0 0
        %3415 = vmatpush1.bf16.msra.mxu0 %v3380
        %3416 = vmatprep.subr.bf16.mxu0 0
        %3417 = vmatpush1.bf16.msra.mxu0 %v3379
        %3418 = vmatprep.subr.bf16.mxu0 0
        %3419 = vmatpush1.bf16.msra.mxu0 %v3378
        %3420 = vmatprep.subr.bf16.mxu0 0
        %3421 = vmatpush1.bf16.msra.mxu0 %v3377
        %3422 = vmatprep.subr.bf16.mxu0 0
        %3423 = vmatpush1.bf16.msra.mxu0 %v3376
        %3424 = vmatprep.subr.bf16.mxu0 0
        %3425 = vmatpush2.bf16.msra.mxu0 %v3391
        %3426 = vmatprep.subr.bf16.mxu0 0
        %3427 = vmatpush2.bf16.msra.mxu0 %v3390
        %3428 = vmatprep.subr.bf16.mxu0 0
        %3429 = vmatpush2.bf16.msra.mxu0 %v3389
        %3430 = vmatprep.subr.bf16.mxu0 0
        %3431 = vmatpush2.bf16.msra.mxu0 %v3388
        %3432 = vmatprep.subr.bf16.mxu0 0
        %3433 = vmatpush2.bf16.msra.mxu0 %v3387
        %3434 = vmatprep.subr.bf16.mxu0 0
        %3435 = vmatpush2.bf16.msra.mxu0 %v3386
        %3436 = vmatprep.subr.bf16.mxu0 0
        %3437 = vmatpush2.bf16.msra.mxu0 %v3385
        %3438 = vmatprep.subr.bf16.mxu0 0
        %3439 = vmatpush2.bf16.msra.mxu0 %v3384
        %3440 = vmatprep.mubr.bf16.mxu0 %v3272
        %3441 = vmatmul.mubr.bf16.gmra.mxu0 %v3271
        %v3442 = vpop.f32.mrf.mxu0
        %v3443 = vadd.f32 %v3310, %v3442
        %v3444 = vpop.f32.mrf.mxu0
        %v3445 = vpop.f32.mrf.mxu0
        %v3446 = vadd.f32 %v3310, %v3445
        %v3447 = vpop.f32.mrf.mxu0
        %3448 = vdwg.mxu0
        %3449 = vst [vmem:[%s353] sm:$0xff] %v3443
        %3450 = vst [vmem:[%s353 + $0x8] sm:$0xff] %v3446
        %s3451 = sand.u32 %s186, 1
        %s3452 = scalar_lea.sflag [#allocation4], %s3451
        %s3453 = sand.u32 %s186, 1
        %s3454 = smul.addr %s3453, 16
        %s3455 = scalar_lea.vmem [#allocation11], %s3454
        // Predicated region
        $region69: #{tpu_custom_call.1} parent=47 // pred_check
          %p3456 = pneg %p196
        $region70: #{tpu_custom_call.1} parent=47 // pred_check_branch
          %3458 = sbr.rel (%p3456) target = $region72
        $region71: #{tpu_custom_call.1} parent=47 // pred_region
          %s3459 = smul.u32 2, %s26
          %s3461 = ssub.s32 256, 256
          %3462 = vsyncadd %s3452, %s3461
          %s3463 = smul.addr %s3459, 128
          %s3464 = scalar_lea.hbm %s7, %s3463
          %s3465 = sshll.u32 %s3455, 4
          %s3466 = int_to_ptr.vmem [resolvable:$true] %s3465
          %3471 = dma.vmem_to_hbm [thread:$0]  %s3466, 256, %s3464, %s3452, 128, 128, 8
        $region72: #{tpu_custom_call.1} parent=47 // pred_fallthru
          _
      $region48: #{tpu_custom_call.1} parent=5 // pred_fallthru
        _
      %p3472 = scmp.le.s32.totalorder 2, %s21
      // Predicated region
      $region73: #{tpu_custom_call.1} parent=5 // pred_check
        %p3473 = pneg %p3472
      $region74: #{tpu_custom_call.1} parent=5 // pred_check_branch
        %3475 = sbr.rel (%p3473) target = $region76
      $region75: #{tpu_custom_call.1} parent=5 // pred_region
        %s3476 = ssub.s32 %s21, 2
        // Predicated region
        $region77: #{tpu_custom_call.1} parent=75 // pred_check
          %p3477 = pneg %p202
        $region78: #{tpu_custom_call.1} parent=75 // pred_check_branch
          %3479 = sbr.rel (%p3477) target = $region80
        $region79: #{tpu_custom_call.1} parent=75 // pred_region
          %s3480 = sand.u32 %s187, 1
          %s3481 = scalar_lea.sflag [#allocation4], %s3480
          %s3482 = sand.u32 %s187, 1
          %s3483 = smul.addr %s3482, 16
          %s3484 = scalar_lea.vmem [#allocation11], %s3483
          %3485 = dma.done %s3481, 256
        $region80: #{tpu_custom_call.1} parent=75 // pred_fallthru
          _
      $region76: #{tpu_custom_call.1} parent=5 // pred_fallthru
        _
    $region6: #{tpu_custom_call.1} parent=1 // loop_footer
      %s25 = sadd.s32 1, %s21
    $region7: #{tpu_custom_call.1} parent=1 // loop_footer_branch
      %20 = sbr.rel target = $region3
    $region8: #{tpu_custom_call.1} parent=1 // loop_exit
      _
    %3486 = vsyncpa [#allocation3], 1
    %s3487 = scalar_lea.sflag [#allocation3], 1
    %3488 = vsyncpa %s3487, 1
    %3489 = vsyncpa [#allocation6], 1
    %3490 = vsyncpa [#allocation9], 1
    %3491 = vsyncpa [#allocation4], 1
    %s3492 = scalar_lea.sflag [#allocation4], 1
    %3493 = vsyncpa %s3492, 1

</llo_original>
